<compile_context>
chip_gen: v7x
topology: tpu7x:2x2x1
jax: 0.10.0
libtpu: 0.0.40
codegen_flags: <defaults>
</compile_context>

<pallas_src>
import jax
import jax.numpy as jnp
from jax.experimental import pallas as pl
from jax.experimental.pallas import tpu as pltpu

BN_EPS = 1e-5


# ----------------------------------------------------------------------------
# Pass 1: g1 = W_g . g on the MXU; per-batch, per-channel moments of g1.
# ----------------------------------------------------------------------------
def _stats1_kernel(g_ref, wg_ref, sum1_ref, sumsq1_ref):
    @pl.when(pl.program_id(1) == 0)
    def _():
        sum1_ref[...] = jnp.zeros_like(sum1_ref)
        sumsq1_ref[...] = jnp.zeros_like(sumsq1_ref)

    g = g_ref[...].astype(jnp.float32)                              # (Fg, tile)
    g1 = jax.lax.dot_general(wg_ref[...], g, (((1,), (0,)), ((), ())),
                             preferred_element_type=jnp.float32)    # (Fl, tile)
    sum1_ref[...] += jnp.sum(g1, axis=1, keepdims=True)             # (Fl, 1)
    sumsq1_ref[...] += jnp.sum(g1 * g1, axis=1, keepdims=True)      # (Fl, 1)


# ----------------------------------------------------------------------------
# Pass 2: g1 (MXU) -> folded BN1 -> relu(+x) -> psi conv (MXU) -> p;
#         per-batch moments of p.
# ----------------------------------------------------------------------------
def _apply1_kernel(g_ref, x_ref, wg_ref, wpsi_ref, scale1_ref, shift1_ref,
                   p_ref, sp_ref, spp_ref):
    @pl.when(pl.program_id(1) == 0)
    def _():
        sp_ref[...] = jnp.zeros_like(sp_ref)
        spp_ref[...] = jnp.zeros_like(spp_ref)

    g = g_ref[...].astype(jnp.float32)                              # (Fg, tile)
    g1 = jax.lax.dot_general(wg_ref[...], g, (((1,), (0,)), ((), ())),
                             preferred_element_type=jnp.float32)    # (Fl, tile)
    # train-mode BN1 folded into per-channel scale/shift, add x, relu.
    s = jnp.maximum(
        g1 * scale1_ref[...] + shift1_ref[...]
        + x_ref[...].astype(jnp.float32), 0.0)                      # (Fl, tile)
    # psi 1x1 conv down to one channel on the MXU.
    p = jax.lax.dot_general(wpsi_ref[...], s, (((1,), (0,)), ((), ())),
                            preferred_element_type=jnp.float32)     # (1, tile)
    p_ref[...] = p.astype(p_ref.dtype)
    sp_ref[...] += jnp.sum(p, axis=1, keepdims=True)                # (1, 1)
    spp_ref[...] += jnp.sum(p * p, axis=1, keepdims=True)           # (1, 1)


# ----------------------------------------------------------------------------
# Pass 3: attn = sigmoid(BN2(p)) with folded scale/shift; out = x * attn.
# ----------------------------------------------------------------------------
def _apply2_kernel(x_ref, p_ref, bn2_ref, out_ref):
    attn = jax.nn.sigmoid(p_ref[...].astype(jnp.float32) * bn2_ref[0]
                          + bn2_ref[1])                             # (1, tile)
    out_ref[...] = (x_ref[...].astype(jnp.float32) * attn).astype(out_ref.dtype)


def _pick_tile(hw, cap=16384):
    """Largest multiple of 128 that divides hw (<= cap); fall back to full hw."""
    best = None
    t = 128
    while t <= min(hw, cap):
        if hw % t == 0:
            best = t
        t += 128
    return best if best is not None else hw


def attention_gate_pallas(g_nchw, x_nchw, wg, gamma1, beta1, wpsi, gamma2, beta2):
    """g_nchw: (N, Fg, H, W), x_nchw: (N, Fl, H, W).  Returns (N, Fl, H, W).

    wg: (Fg, Fl), wpsi: (Fl, 1)  (PyTorch Conv2d weight transposed, 1x1 kernel)
    gamma1/beta1: (1, Fl), gamma2/beta2: (1, 1).
    """
    N, Fg, H, W = g_nchw.shape
    _, Fl, _, _ = x_nchw.shape
    HW = H * W
    M = N * HW
    tile = _pick_tile(HW)
    n_t = HW // tile

    # Free reshapes only: channels stay on sublanes, spatial (lane-dense) last.
    g3 = g_nchw.reshape(N, Fg, HW)
    x3 = x_nchw.reshape(N, Fl, HW)

    wg_t = wg.astype(jnp.float32).T          # (Fl, Fg)
    wpsi_t = wpsi.astype(jnp.float32).T      # (1, Fl)

    # ---- pass 1: per-batch first/second moments of g1 = W_g . g -------------
    sum1, sumsq1 = pl.pallas_call(
        _stats1_kernel,
        grid=(N, n_t),
        in_specs=[pl.BlockSpec((None, Fg, tile), lambda n, i: (n, 0, i)),
                  pl.BlockSpec((Fl, Fg), lambda n, i: (0, 0))],
        out_specs=[pl.BlockSpec((None, Fl, 1), lambda n, i: (n, 0, 0)),
                   pl.BlockSpec((None, Fl, 1), lambda n, i: (n, 0, 0))],
        out_shape=[jax.ShapeDtypeStruct((N, Fl, 1), jnp.float32),
                   jax.ShapeDtypeStruct((N, Fl, 1), jnp.float32)],
        compiler_params=pltpu.CompilerParams(
            dimension_semantics=("parallel", "arbitrary")),
    )(g3, wg_t)

    # BN1 train-mode (biased) stats from the moments (tiny, plain-JAX glue).
    mean1 = jnp.sum(sum1, axis=0)[:, 0] / M                          # (Fl,)
    var1 = jnp.maximum(jnp.sum(sumsq1, axis=0)[:, 0] / M - mean1 * mean1, 0.0)
    scale1 = gamma1.reshape(-1).astype(jnp.float32) * jax.lax.rsqrt(var1 + BN_EPS)
    shift1 = beta1.reshape(-1).astype(jnp.float32) - mean1 * scale1
    scale1 = scale1.reshape(Fl, 1)
    shift1 = shift1.reshape(Fl, 1)

    # ---- pass 2: BN1-apply + relu + psi conv; p plus its per-batch moments --
    p, sp, spp = pl.pallas_call(
        _apply1_kernel,
        grid=(N, n_t),
        in_specs=[pl.BlockSpec((None, Fg, tile), lambda n, i: (n, 0, i)),
                  pl.BlockSpec((None, Fl, tile), lambda n, i: (n, 0, i)),
                  pl.BlockSpec((Fl, Fg), lambda n, i: (0, 0)),
                  pl.BlockSpec((1, Fl), lambda n, i: (0, 0)),
                  pl.BlockSpec((Fl, 1), lambda n, i: (0, 0)),
                  pl.BlockSpec((Fl, 1), lambda n, i: (0, 0))],
        out_specs=[pl.BlockSpec((None, 1, tile), lambda n, i: (n, 0, i)),
                   pl.BlockSpec((None, 1, 1), lambda n, i: (n, 0, 0)),
                   pl.BlockSpec((None, 1, 1), lambda n, i: (n, 0, 0))],
        out_shape=[jax.ShapeDtypeStruct((N, 1, HW), x_nchw.dtype),
                   jax.ShapeDtypeStruct((N, 1, 1), jnp.float32),
                   jax.ShapeDtypeStruct((N, 1, 1), jnp.float32)],
        compiler_params=pltpu.CompilerParams(
            dimension_semantics=("parallel", "arbitrary")),
    )(g3, x3, wg_t, wpsi_t, scale1, shift1)

    # BN2 train-mode (biased) stats.
    mean2 = jnp.sum(sp) / M
    var2 = jnp.maximum(jnp.sum(spp) / M - mean2 * mean2, 0.0)
    scale2 = gamma2.reshape(()).astype(jnp.float32) * jax.lax.rsqrt(var2 + BN_EPS)
    shift2 = beta2.reshape(()).astype(jnp.float32) - mean2 * scale2
    bn2 = jnp.stack([scale2, shift2]).astype(jnp.float32)            # (2,)

    # ---- pass 3: BN2 + sigmoid + gate (fully parallel) ----------------------
    out3 = pl.pallas_call(
        _apply2_kernel,
        grid=(N, n_t),
        in_specs=[pl.BlockSpec((None, Fl, tile), lambda n, i: (n, 0, i)),
                  pl.BlockSpec((None, 1, tile), lambda n, i: (n, 0, i)),
                  pl.BlockSpec(memory_space=pltpu.MemorySpace.SMEM)],
        out_specs=pl.BlockSpec((None, Fl, tile), lambda n, i: (n, 0, i)),
        out_shape=jax.ShapeDtypeStruct((N, Fl, HW), x_nchw.dtype),
        compiler_params=pltpu.CompilerParams(
            dimension_semantics=("parallel", "parallel")),
    )(x3, p, bn2)

    return out3.reshape(N, Fl, H, W)


def attention_gate_reference(g_nchw, x_nchw, wg, gamma1, beta1, wpsi, gamma2, beta2):
    """Pure-JAX reference mirroring the PyTorch forward (train-mode BN)."""
    N, Fg, H, W = g_nchw.shape
    _, Fl, _, _ = x_nchw.shape
    g2d = jnp.transpose(g_nchw, (0, 2, 3, 1)).reshape(-1, Fg)
    x2d = jnp.transpose(x_nchw, (0, 2, 3, 1)).reshape(-1, Fl)

    g1 = g2d @ wg
    m1 = g1.mean(0, keepdims=True)
    v1 = ((g1 - m1) ** 2).mean(0, keepdims=True)
    g1 = (g1 - m1) / jnp.sqrt(v1 + BN_EPS) * gamma1 + beta1

    s = jnp.maximum(g1 + x2d, 0.0)
    p = s @ wpsi
    m2 = p.mean()
    v2 = ((p - m2) ** 2).mean()
    p = (p - m2) / jnp.sqrt(v2 + BN_EPS) * gamma2[0, 0] + beta2[0, 0]
    out = x2d * jax.nn.sigmoid(p)
    return jnp.transpose(out.reshape(N, H, W, Fl), (0, 3, 1, 2))


if __name__ == "__main__":
    # Small shapes consistent with the module: F_g=8, F_l=4, batch=2, spatial=16.
    N, Fg, Fl, H, W = 2, 8, 4, 16, 16
    key = jax.random.PRNGKey(0)
    k_g, k_x, k_wg, k_wp, k_g1, k_b1, k_g2, k_b2 = jax.random.split(key, 8)

    g = jax.random.normal(k_g, (N, Fg, H, W), dtype=jnp.float32)
    x = jax.random.normal(k_x, (N, Fl, H, W), dtype=jnp.float32)

    # Conv weights stored as (Cin, Cout); PyTorch Conv2d weight (Cout,Cin,1,1)
    # is just the transpose of this.
    wg = jax.random.normal(k_wg, (Fg, Fl), dtype=jnp.float32) * 0.2
    wpsi = jax.random.normal(k_wp, (Fl, 1), dtype=jnp.float32) * 0.2
    gamma1 = 1.0 + 0.1 * jax.random.normal(k_g1, (1, Fl), dtype=jnp.float32)
    beta1 = 0.1 * jax.random.normal(k_b1, (1, Fl), dtype=jnp.float32)
    gamma2 = 1.0 + 0.1 * jax.random.normal(k_g2, (1, 1), dtype=jnp.float32)
    beta2 = 0.1 * jax.random.normal(k_b2, (1, 1), dtype=jnp.float32)

    fn = jax.jit(attention_gate_pallas)
    out = jax.block_until_ready(fn(g, x, wg, gamma1, beta1, wpsi, gamma2, beta2))

    ref = attention_gate_reference(g, x, wg, gamma1, beta1, wpsi, gamma2, beta2)
    assert out.shape == (N, Fl, H, W)
    assert jnp.allclose(out, ref, atol=1e-4, rtol=1e-4), "mismatch vs reference"

    print("KERNEL_OK")
</pallas_src>

<mosaic_0001>
module attributes {stable_mosaic.version = 11 : i64} {
  func.func @_stats1_kernel(%arg0: i32, %arg1: i32, %arg2: memref<1x8x256xf32, #tpu.memory_space<vmem>>, %arg3: memref<4x8xf32, #tpu.memory_space<vmem>>, %arg4: memref<1x4x1xf32, #tpu.memory_space<vmem>>, %arg5: memref<1x4x1xf32, #tpu.memory_space<vmem>>) attributes {dimension_semantics = [#tpu.dimension_semantics<parallel>, #tpu.dimension_semantics<arbitrary>], iteration_bounds = array<i64: 2, 1>, scalar_prefetch = 0 : i64, scratch_operands = 0 : i64, tpu.core_type = #tpu.core_type<tc>, window_params = [{transform_indices = @transform_0, window_bounds = array<i64: 1, 8, 256>}, {pipeline_mode = #tpu.pipeline_mode<synchronous>, transform_indices = @transform_1, window_bounds = array<i64: 4, 8>}, {transform_indices = @transform_2, window_bounds = array<i64: 1, 4, 1>}, {transform_indices = @transform_3, window_bounds = array<i64: 1, 4, 1>}]} {
    %c0_i32 = arith.constant 0 : i32
    %0 = arith.cmpi eq, %arg1, %c0_i32 : i32
    %1 = arith.extui %0 : i1 to i32
    %c0_i32_0 = arith.constant 0 : i32
    %2 = arith.cmpi ne, %1, %c0_i32_0 : i32
    scf.if %2 {
      %cst_19 = arith.constant 0.000000e+00 : f32
      %24 = vector.broadcast %cst_19 : f32 to vector<4x1xf32>
      %c0_20 = arith.constant 0 : index
      %c0_21 = arith.constant 0 : index
      %c0_22 = arith.constant 0 : index
      %25 = vector.load %arg4[%c0_20, %c0_21, %c0_22] : memref<1x4x1xf32, #tpu.memory_space<vmem>>, vector<1x4x1xf32>
      %26 = vector.shape_cast %25 : vector<1x4x1xf32> to vector<4x1xf32>
      %27 = vector.shape_cast %24 : vector<4x1xf32> to vector<1x4x1xf32>
      tpu.vector_store %arg4[%c0_20, %c0_21, %c0_22], %27 {strides = array<i32>} : memref<1x4x1xf32, #tpu.memory_space<vmem>>, vector<1x4x1xf32>,
      %cst_23 = arith.constant 0.000000e+00 : f32
      %28 = vector.broadcast %cst_23 : f32 to vector<4x1xf32>
      %c0_24 = arith.constant 0 : index
      %c0_25 = arith.constant 0 : index
      %c0_26 = arith.constant 0 : index
      %29 = vector.load %arg5[%c0_24, %c0_25, %c0_26] : memref<1x4x1xf32, #tpu.memory_space<vmem>>, vector<1x4x1xf32>
      %30 = vector.shape_cast %29 : vector<1x4x1xf32> to vector<4x1xf32>
      %31 = vector.shape_cast %28 : vector<4x1xf32> to vector<1x4x1xf32>
      tpu.vector_store %arg5[%c0_24, %c0_25, %c0_26], %31 {strides = array<i32>} : memref<1x4x1xf32, #tpu.memory_space<vmem>>, vector<1x4x1xf32>,
    } else {
    }
    %c0 = arith.constant 0 : index
    %c0_1 = arith.constant 0 : index
    %c0_2 = arith.constant 0 : index
    %3 = vector.load %arg2[%c0, %c0_1, %c0_2] : memref<1x8x256xf32, #tpu.memory_space<vmem>>, vector<1x8x256xf32>
    %4 = vector.shape_cast %3 : vector<1x8x256xf32> to vector<8x256xf32>
    %c0_3 = arith.constant 0 : index
    %c0_4 = arith.constant 0 : index
    %5 = vector.load %arg3[%c0_3, %c0_4] : memref<4x8xf32, #tpu.memory_space<vmem>>, vector<4x8xf32>
    %cst = arith.constant dense<0.000000e+00> : vector<4x256xf32>
    %6 = tpu.matmul %5, %4, %cst {dimension_numbers = #tpu.dot_dimension_numbers<[1], [0], [0], [1], [0, 0, 1, 1], [], []>} : vector<4x8xf32>, vector<8x256xf32>, vector<4x256xf32> -> vector<4x256xf32>
    %c0_5 = arith.constant 0 : index
    %c0_6 = arith.constant 0 : index
    %c0_7 = arith.constant 0 : index
    %7 = vector.load %arg4[%c0_5, %c0_6, %c0_7] : memref<1x4x1xf32, #tpu.memory_space<vmem>>, vector<1x4x1xf32>
    %8 = vector.shape_cast %7 : vector<1x4x1xf32> to vector<4x1xf32>
    %cst_8 = arith.constant dense<0.000000e+00> : vector<4xf32>
    %9 = vector.multi_reduction <add>, %6, %cst_8 [1] : vector<4x256xf32> to vector<4xf32>
    %10 = vector.shape_cast %9 : vector<4xf32> to vector<4x1xf32>
    %11 = arith.addf %8, %10 : vector<4x1xf32>
    %c0_9 = arith.constant 0 : index
    %c0_10 = arith.constant 0 : index
    %c0_11 = arith.constant 0 : index
    %12 = vector.load %arg4[%c0_9, %c0_10, %c0_11] : memref<1x4x1xf32, #tpu.memory_space<vmem>>, vector<1x4x1xf32>
    %13 = vector.shape_cast %12 : vector<1x4x1xf32> to vector<4x1xf32>
    %14 = vector.shape_cast %11 : vector<4x1xf32> to vector<1x4x1xf32>
    tpu.vector_store %arg4[%c0_9, %c0_10, %c0_11], %14 {strides = array<i32>} : memref<1x4x1xf32, #tpu.memory_space<vmem>>, vector<1x4x1xf32>,
    %c0_12 = arith.constant 0 : index
    %c0_13 = arith.constant 0 : index
    %c0_14 = arith.constant 0 : index
    %15 = vector.load %arg5[%c0_12, %c0_13, %c0_14] : memref<1x4x1xf32, #tpu.memory_space<vmem>>, vector<1x4x1xf32>
    %16 = vector.shape_cast %15 : vector<1x4x1xf32> to vector<4x1xf32>
    %17 = arith.mulf %6, %6 : vector<4x256xf32>
    %cst_15 = arith.constant dense<0.000000e+00> : vector<4xf32>
    %18 = vector.multi_reduction <add>, %17, %cst_15 [1] : vector<4x256xf32> to vector<4xf32>
    %19 = vector.shape_cast %18 : vector<4xf32> to vector<4x1xf32>
    %20 = arith.addf %16, %19 : vector<4x1xf32>
    %c0_16 = arith.constant 0 : index
    %c0_17 = arith.constant 0 : index
    %c0_18 = arith.constant 0 : index
    %21 = vector.load %arg5[%c0_16, %c0_17, %c0_18] : memref<1x4x1xf32, #tpu.memory_space<vmem>>, vector<1x4x1xf32>
    %22 = vector.shape_cast %21 : vector<1x4x1xf32> to vector<4x1xf32>
    %23 = vector.shape_cast %20 : vector<4x1xf32> to vector<1x4x1xf32>
    tpu.vector_store %arg5[%c0_16, %c0_17, %c0_18], %23 {strides = array<i32>} : memref<1x4x1xf32, #tpu.memory_space<vmem>>, vector<1x4x1xf32>,
    return
  }
  func.func @transform_0(%arg0: i32, %arg1: i32) -> (i32, i32, i32) {
    %c0_i32 = arith.constant 0 : i32
    %c0_i32_0 = arith.constant 0 : i32
    return %arg0, %c0_i32, %arg1 : i32, i32, i32
  }
  func.func @transform_1(%arg0: i32, %arg1: i32) -> (i32, i32) {
    %c0_i32 = arith.constant 0 : i32
    %c0_i32_0 = arith.constant 0 : i32
    %c0_i32_1 = arith.constant 0 : i32
    return %c0_i32, %c0_i32_0 : i32, i32
  }
  func.func @transform_2(%arg0: i32, %arg1: i32) -> (i32, i32, i32) {
    %c0_i32 = arith.constant 0 : i32
    %c0_i32_0 = arith.constant 0 : i32
    %c0_i32_1 = arith.constant 0 : i32
    return %arg0, %c0_i32, %c0_i32_0 : i32, i32, i32
  }
  func.func @transform_3(%arg0: i32, %arg1: i32) -> (i32, i32, i32) {
    %c0_i32 = arith.constant 0 : i32
    %c0_i32_0 = arith.constant 0 : i32
    %c0_i32_1 = arith.constant 0 : i32
    return %arg0, %c0_i32, %c0_i32_0 : i32, i32, i32
  }
}

module attributes {stable_mosaic.version = 11 : i64} {
  func.func @_apply1_kernel(%arg0: i32, %arg1: i32, %arg2: memref<1x8x256xf32, #tpu.memory_space<vmem>>, %arg3: memref<1x4x256xf32, #tpu.memory_space<vmem>>, %arg4: memref<4x8xf32, #tpu.memory_space<vmem>>, %arg5: memref<1x4xf32, #tpu.memory_space<vmem>>, %arg6: memref<4x1xf32, #tpu.memory_space<vmem>>, %arg7: memref<4x1xf32, #tpu.memory_space<vmem>>, %arg8: memref<1x1x256xf32, #tpu.memory_space<vmem>>, %arg9: memref<1x1x1xf32, #tpu.memory_space<vmem>>, %arg10: memref<1x1x1xf32, #tpu.memory_space<vmem>>) attributes {dimension_semantics = [#tpu.dimension_semantics<parallel>, #tpu.dimension_semantics<arbitrary>], iteration_bounds = array<i64: 2, 1>, scalar_prefetch = 0 : i64, scratch_operands = 0 : i64, tpu.core_type = #tpu.core_type<tc>, window_params = [{transform_indices = @transform_0, window_bounds = array<i64: 1, 8, 256>}, {transform_indices = @transform_1, window_bounds = array<i64: 1, 4, 256>}, {pipeline_mode = #tpu.pipeline_mode<synchronous>, transform_indices = @transform_2, window_bounds = array<i64: 4, 8>}, {pipeline_mode = #tpu.pipeline_mode<synchronous>, transform_indices = @transform_3, window_bounds = array<i64: 1, 4>}, {pipeline_mode = #tpu.pipeline_mode<synchronous>, transform_indices = @transform_4, window_bounds = array<i64: 4, 1>}, {pipeline_mode = #tpu.pipeline_mode<synchronous>, transform_indices = @transform_5, window_bounds = array<i64: 4, 1>}, {transform_indices = @transform_6, window_bounds = array<i64: 1, 1, 256>}, {transform_indices = @transform_7, window_bounds = array<i64: 1, 1, 1>}, {transform_indices = @transform_8, window_bounds = array<i64: 1, 1, 1>}]} {
    %c0_i32 = arith.constant 0 : i32
    %0 = arith.cmpi eq, %arg1, %c0_i32 : i32
    %1 = arith.extui %0 : i1 to i32
    %c0_i32_0 = arith.constant 0 : i32
    %2 = arith.cmpi ne, %1, %c0_i32_0 : i32
    scf.if %2 {
      %cst_33 = arith.constant 0.000000e+00 : f32
      %40 = vector.broadcast %cst_33 : f32 to vector<1x1xf32>
      %c0_34 = arith.constant 0 : index
      %c0_35 = arith.constant 0 : index
      %c0_36 = arith.constant 0 : index
      %41 = vector.load %arg9[%c0_34, %c0_35, %c0_36] : memref<1x1x1xf32, #tpu.memory_space<vmem>>, vector<1x1x1xf32>
      %42 = vector.shape_cast %41 : vector<1x1x1xf32> to vector<1x1xf32>
      %43 = vector.shape_cast %40 : vector<1x1xf32> to vector<1x1x1xf32>
      tpu.vector_store %arg9[%c0_34, %c0_35, %c0_36], %43 {strides = array<i32>} : memref<1x1x1xf32, #tpu.memory_space<vmem>>, vector<1x1x1xf32>,
      %cst_37 = arith.constant 0.000000e+00 : f32
      %44 = vector.broadcast %cst_37 : f32 to vector<1x1xf32>
      %c0_38 = arith.constant 0 : index
      %c0_39 = arith.constant 0 : index
      %c0_40 = arith.constant 0 : index
      %45 = vector.load %arg10[%c0_38, %c0_39, %c0_40] : memref<1x1x1xf32, #tpu.memory_space<vmem>>, vector<1x1x1xf32>
      %46 = vector.shape_cast %45 : vector<1x1x1xf32> to vector<1x1xf32>
      %47 = vector.shape_cast %44 : vector<1x1xf32> to vector<1x1x1xf32>
      tpu.vector_store %arg10[%c0_38, %c0_39, %c0_40], %47 {strides = array<i32>} : memref<1x1x1xf32, #tpu.memory_space<vmem>>, vector<1x1x1xf32>,
    } else {
    }
    %c0 = arith.constant 0 : index
    %c0_1 = arith.constant 0 : index
    %c0_2 = arith.constant 0 : index
    %3 = vector.load %arg2[%c0, %c0_1, %c0_2] : memref<1x8x256xf32, #tpu.memory_space<vmem>>, vector<1x8x256xf32>
    %4 = vector.shape_cast %3 : vector<1x8x256xf32> to vector<8x256xf32>
    %c0_3 = arith.constant 0 : index
    %c0_4 = arith.constant 0 : index
    %5 = vector.load %arg4[%c0_3, %c0_4] : memref<4x8xf32, #tpu.memory_space<vmem>>, vector<4x8xf32>
    %cst = arith.constant dense<0.000000e+00> : vector<4x256xf32>
    %6 = tpu.matmul %5, %4, %cst {dimension_numbers = #tpu.dot_dimension_numbers<[1], [0], [0], [1], [0, 0, 1, 1], [], []>} : vector<4x8xf32>, vector<8x256xf32>, vector<4x256xf32> -> vector<4x256xf32>
    %c0_5 = arith.constant 0 : index
    %c0_6 = arith.constant 0 : index
    %7 = vector.load %arg6[%c0_5, %c0_6] : memref<4x1xf32, #tpu.memory_space<vmem>>, vector<4x1xf32>
    %8 = vector.broadcast %7 : vector<4x1xf32> to vector<4x256xf32>
    %9 = arith.mulf %6, %8 : vector<4x256xf32>
    %c0_7 = arith.constant 0 : index
    %c0_8 = arith.constant 0 : index
    %10 = vector.load %arg7[%c0_7, %c0_8] : memref<4x1xf32, #tpu.memory_space<vmem>>, vector<4x1xf32>
    %11 = vector.broadcast %10 : vector<4x1xf32> to vector<4x256xf32>
    %12 = arith.addf %9, %11 : vector<4x256xf32>
    %c0_9 = arith.constant 0 : index
    %c0_10 = arith.constant 0 : index
    %c0_11 = arith.constant 0 : index
    %13 = vector.load %arg3[%c0_9, %c0_10, %c0_11] : memref<1x4x256xf32, #tpu.memory_space<vmem>>, vector<1x4x256xf32>
    %14 = vector.shape_cast %13 : vector<1x4x256xf32> to vector<4x256xf32>
    %15 = arith.addf %12, %14 : vector<4x256xf32>
    %cst_12 = arith.constant 0.000000e+00 : f32
    %16 = vector.broadcast %cst_12 : f32 to vector<4x256xf32>
    %17 = arith.maximumf %15, %16 : vector<4x256xf32>
    %c0_13 = arith.constant 0 : index
    %c0_14 = arith.constant 0 : index
    %18 = vector.load %arg5[%c0_13, %c0_14] : memref<1x4xf32, #tpu.memory_space<vmem>>, vector<1x4xf32>
    %cst_15 = arith.constant dense<0.000000e+00> : vector<1x256xf32>
    %19 = tpu.matmul %18, %17, %cst_15 {dimension_numbers = #tpu.dot_dimension_numbers<[1], [0], [0], [1], [0, 0, 1, 1], [], []>} : vector<1x4xf32>, vector<4x256xf32>, vector<1x256xf32> -> vector<1x256xf32>
    %c0_16 = arith.constant 0 : index
    %c0_17 = arith.constant 0 : index
    %c0_18 = arith.constant 0 : index
    %20 = vector.load %arg8[%c0_16, %c0_17, %c0_18] : memref<1x1x256xf32, #tpu.memory_space<vmem>>, vector<1x1x256xf32>
    %21 = vector.shape_cast %20 : vector<1x1x256xf32> to vector<1x256xf32>
    %22 = vector.shape_cast %19 : vector<1x256xf32> to vector<1x1x256xf32>
    tpu.vector_store %arg8[%c0_16, %c0_17, %c0_18], %22 {strides = array<i32>} : memref<1x1x256xf32, #tpu.memory_space<vmem>>, vector<1x1x256xf32>,
    %c0_19 = arith.constant 0 : index
    %c0_20 = arith.constant 0 : index
    %c0_21 = arith.constant 0 : index
    %23 = vector.load %arg9[%c0_19, %c0_20, %c0_21] : memref<1x1x1xf32, #tpu.memory_space<vmem>>, vector<1x1x1xf32>
    %24 = vector.shape_cast %23 : vector<1x1x1xf32> to vector<1x1xf32>
    %cst_22 = arith.constant dense<0.000000e+00> : vector<1xf32>
    %25 = vector.multi_reduction <add>, %19, %cst_22 [1] : vector<1x256xf32> to vector<1xf32>
    %26 = vector.shape_cast %25 : vector<1xf32> to vector<1x1xf32>
    %27 = arith.addf %24, %26 : vector<1x1xf32>
    %c0_23 = arith.constant 0 : index
    %c0_24 = arith.constant 0 : index
    %c0_25 = arith.constant 0 : index
    %28 = vector.load %arg9[%c0_23, %c0_24, %c0_25] : memref<1x1x1xf32, #tpu.memory_space<vmem>>, vector<1x1x1xf32>
    %29 = vector.shape_cast %28 : vector<1x1x1xf32> to vector<1x1xf32>
    %30 = vector.shape_cast %27 : vector<1x1xf32> to vector<1x1x1xf32>
    tpu.vector_store %arg9[%c0_23, %c0_24, %c0_25], %30 {strides = array<i32>} : memref<1x1x1xf32, #tpu.memory_space<vmem>>, vector<1x1x1xf32>,
    %c0_26 = arith.constant 0 : index
    %c0_27 = arith.constant 0 : index
    %c0_28 = arith.constant 0 : index
    %31 = vector.load %arg10[%c0_26, %c0_27, %c0_28] : memref<1x1x1xf32, #tpu.memory_space<vmem>>, vector<1x1x1xf32>
    %32 = vector.shape_cast %31 : vector<1x1x1xf32> to vector<1x1xf32>
    %33 = arith.mulf %19, %19 : vector<1x256xf32>
    %cst_29 = arith.constant dense<0.000000e+00> : vector<1xf32>
    %34 = vector.multi_reduction <add>, %33, %cst_29 [1] : vector<1x256xf32> to vector<1xf32>
    %35 = vector.shape_cast %34 : vector<1xf32> to vector<1x1xf32>
    %36 = arith.addf %32, %35 : vector<1x1xf32>
    %c0_30 = arith.constant 0 : index
    %c0_31 = arith.constant 0 : index
    %c0_32 = arith.constant 0 : index
    %37 = vector.load %arg10[%c0_30, %c0_31, %c0_32] : memref<1x1x1xf32, #tpu.memory_space<vmem>>, vector<1x1x1xf32>
    %38 = vector.shape_cast %37 : vector<1x1x1xf32> to vector<1x1xf32>
    %39 = vector.shape_cast %36 : vector<1x1xf32> to vector<1x1x1xf32>
    tpu.vector_store %arg10[%c0_30, %c0_31, %c0_32], %39 {strides = array<i32>} : memref<1x1x1xf32, #tpu.memory_space<vmem>>, vector<1x1x1xf32>,
    return
  }
  func.func @transform_0(%arg0: i32, %arg1: i32) -> (i32, i32, i32) {
    %c0_i32 = arith.constant 0 : i32
    %c0_i32_0 = arith.constant 0 : i32
    return %arg0, %c0_i32, %arg1 : i32, i32, i32
  }
  func.func @transform_1(%arg0: i32, %arg1: i32) -> (i32, i32, i32) {
    %c0_i32 = arith.constant 0 : i32
    %c0_i32_0 = arith.constant 0 : i32
    return %arg0, %c0_i32, %arg1 : i32, i32, i32
  }
  func.func @transform_2(%arg0: i32, %arg1: i32) -> (i32, i32) {
    %c0_i32 = arith.constant 0 : i32
    %c0_i32_0 = arith.constant 0 : i32
    %c0_i32_1 = arith.constant 0 : i32
    return %c0_i32, %c0_i32_0 : i32, i32
  }
  func.func @transform_3(%arg0: i32, %arg1: i32) -> (i32, i32) {
    %c0_i32 = arith.constant 0 : i32
    %c0_i32_0 = arith.constant 0 : i32
    %c0_i32_1 = arith.constant 0 : i32
    return %c0_i32, %c0_i32_0 : i32, i32
  }
  func.func @transform_4(%arg0: i32, %arg1: i32) -> (i32, i32) {
    %c0_i32 = arith.constant 0 : i32
    %c0_i32_0 = arith.constant 0 : i32
    %c0_i32_1 = arith.constant 0 : i32
    return %c0_i32, %c0_i32_0 : i32, i32
  }
  func.func @transform_5(%arg0: i32, %arg1: i32) -> (i32, i32) {
    %c0_i32 = arith.constant 0 : i32
    %c0_i32_0 = arith.constant 0 : i32
    %c0_i32_1 = arith.constant 0 : i32
    return %c0_i32, %c0_i32_0 : i32, i32
  }
  func.func @transform_6(%arg0: i32, %arg1: i32) -> (i32, i32, i32) {
    %c0_i32 = arith.constant 0 : i32
    %c0_i32_0 = arith.constant 0 : i32
    return %arg0, %c0_i32, %arg1 : i32, i32, i32
  }
  func.func @transform_7(%arg0: i32, %arg1: i32) -> (i32, i32, i32) {
    %c0_i32 = arith.constant 0 : i32
    %c0_i32_0 = arith.constant 0 : i32
    %c0_i32_1 = arith.constant 0 : i32
    return %arg0, %c0_i32, %c0_i32_0 : i32, i32, i32
  }
  func.func @transform_8(%arg0: i32, %arg1: i32) -> (i32, i32, i32) {
    %c0_i32 = arith.constant 0 : i32
    %c0_i32_0 = arith.constant 0 : i32
    %c0_i32_1 = arith.constant 0 : i32
    return %arg0, %c0_i32, %c0_i32_0 : i32, i32, i32
  }
}

module attributes {stable_mosaic.version = 11 : i64} {
  func.func @_apply2_kernel(%arg0: i32, %arg1: i32, %arg2: memref<1x4x256xf32, #tpu.memory_space<vmem>>, %arg3: memref<1x1x256xf32, #tpu.memory_space<vmem>>, %arg4: memref<2xf32, #tpu.memory_space<smem>>, %arg5: memref<1x4x256xf32, #tpu.memory_space<vmem>>) attributes {dimension_semantics = [#tpu.dimension_semantics<parallel>, #tpu.dimension_semantics<parallel>], iteration_bounds = array<i64: 2, 1>, scalar_prefetch = 0 : i64, scratch_operands = 0 : i64, tpu.core_type = #tpu.core_type<tc>, window_params = [{transform_indices = @transform_0, window_bounds = array<i64: 1, 4, 256>}, {transform_indices = @transform_1, window_bounds = array<i64: 1, 1, 256>}, {transform_indices = @transform_2, window_bounds = array<i64: 2>}, {transform_indices = @transform_3, window_bounds = array<i64: 1, 4, 256>}]} {
    %c0 = arith.constant 0 : index
    %c0_0 = arith.constant 0 : index
    %c0_1 = arith.constant 0 : index
    %0 = vector.load %arg3[%c0, %c0_0, %c0_1] : memref<1x1x256xf32, #tpu.memory_space<vmem>>, vector<1x1x256xf32>
    %1 = vector.shape_cast %0 : vector<1x1x256xf32> to vector<1x256xf32>
    %c0_2 = arith.constant 0 : index
    %2 = memref.load %arg4[%c0_2] : memref<2xf32, #tpu.memory_space<smem>>
    %3 = vector.broadcast %2 : f32 to vector<1x256xf32>
    %4 = arith.mulf %1, %3 : vector<1x256xf32>
    %c1 = arith.constant 1 : index
    %5 = memref.load %arg4[%c1] : memref<2xf32, #tpu.memory_space<smem>>
    %6 = vector.broadcast %5 : f32 to vector<1x256xf32>
    %7 = arith.addf %4, %6 : vector<1x256xf32>
    %8 = arith.negf %7 : vector<1x256xf32>
    %9 = math.exp %8 : vector<1x256xf32>
    %cst = arith.constant 1.000000e+00 : f32
    %10 = vector.broadcast %cst : f32 to vector<1x256xf32>
    %11 = arith.addf %10, %9 : vector<1x256xf32>
    %12 = arith.divf %10, %11 : vector<1x256xf32>
    %c0_3 = arith.constant 0 : index
    %c0_4 = arith.constant 0 : index
    %c0_5 = arith.constant 0 : index
    %13 = vector.load %arg2[%c0_3, %c0_4, %c0_5] : memref<1x4x256xf32, #tpu.memory_space<vmem>>, vector<1x4x256xf32>
    %14 = vector.shape_cast %13 : vector<1x4x256xf32> to vector<4x256xf32>
    %15 = vector.broadcast %12 : vector<1x256xf32> to vector<4x256xf32>
    %16 = arith.mulf %14, %15 : vector<4x256xf32>
    %c0_6 = arith.constant 0 : index
    %c0_7 = arith.constant 0 : index
    %c0_8 = arith.constant 0 : index
    %17 = vector.load %arg5[%c0_6, %c0_7, %c0_8] : memref<1x4x256xf32, #tpu.memory_space<vmem>>, vector<1x4x256xf32>
    %18 = vector.shape_cast %17 : vector<1x4x256xf32> to vector<4x256xf32>
    %19 = vector.shape_cast %16 : vector<4x256xf32> to vector<1x4x256xf32>
    tpu.vector_store %arg5[%c0_6, %c0_7, %c0_8], %19 {strides = array<i32>} : memref<1x4x256xf32, #tpu.memory_space<vmem>>, vector<1x4x256xf32>,
    return
  }
  func.func @transform_0(%arg0: i32, %arg1: i32) -> (i32, i32, i32) {
    %c0_i32 = arith.constant 0 : i32
    %c0_i32_0 = arith.constant 0 : i32
    return %arg0, %c0_i32, %arg1 : i32, i32, i32
  }
  func.func @transform_1(%arg0: i32, %arg1: i32) -> (i32, i32, i32) {
    %c0_i32 = arith.constant 0 : i32
    %c0_i32_0 = arith.constant 0 : i32
    return %arg0, %c0_i32, %arg1 : i32, i32, i32
  }
  func.func @transform_2(%arg0: i32, %arg1: i32) -> i32 {
    %c0_i32 = arith.constant 0 : i32
    %c0_i32_0 = arith.constant 0 : i32
    return %c0_i32 : i32
  }
  func.func @transform_3(%arg0: i32, %arg1: i32) -> (i32, i32, i32) {
    %c0_i32 = arith.constant 0 : i32
    %c0_i32_0 = arith.constant 0 : i32
    return %arg0, %c0_i32, %arg1 : i32, i32, i32
  }
}

</mosaic_0001>

<llo_original>
// kernel: attention_gate_pallas.3
$region0: #{attention_gate_pallas.3}
  #allocation0 [shape = 'u32[]', space=smem, size = 0x4, offset = 0x4, fixed_abs, tag = 'smem constant byte address 0x4 - core index']
  #allocation1 [shape = 'u32[144,128]{1,0:T(1,128)}', space=vmem, size = 0x12000, scoped, tag = 'internal scratch']
  %s0 = inlined_call_operand.vmem [shape: f32[2,8,256], index: 0, kind: input, shape index: {}]
  %s1 = inlined_call_operand.vmem [shape: f32[4,8], index: 1, kind: input, shape index: {}]
  %s2 = inlined_call_operand.vmem [shape: f32[2,4,1], index: 2, kind: output, shape index: {0}]
  %s3 = inlined_call_operand.vmem [shape: f32[2,4,1], index: 3, kind: output, shape index: {1}]
  %4 = xla_tuple %s2, %s3
  %s5 = sld [smem:[#allocation0]]
  $region53: #{attention_gate_pallas.3} parent=0
    _
  %s7 = ssub.s32 1, %s5
  %s8 = scalar_select 0, %s7, %s5
  loop: start=0, step=1, limit=4
  $region2: #{attention_gate_pallas.3} parent=0 // loop_pre_header
    _
  $region3: #{attention_gate_pallas.3} parent=0 // loop_header
    %s10 = sphi 0, %s14
    %p11 = scmp.ge.s32.totalorder %s10, 4
    %s17 = sphi 0, %s29
    %s18 = sphi 0, %s25
    %s19 = sphi 0, %s17
    %s20 = sphi 0, %s18
    %s21 = sphi 0, %s19
    %s22 = sphi 0, %s20
    %s34 = sphi 0, %s36
    %s37 = sphi 0, %s34
    %s38 = sphi 0, %s37
    %s54 = sphi 0, %s38
    %s58 = sphi 0, %s58
    %s60 = sphi 0, %s58
    %s61 = sphi 0, %s60
    %s75 = sphi 0, %s61
    %s81 = sphi 0, %s83
    %s84 = sphi 0, %s81
    %s85 = sphi 0, %s84
    %s101 = sphi 0, %s85
    %s107 = sphi 0, %s109
    %s110 = sphi 0, %s107
    %s111 = sphi 0, %s110
    %s127 = sphi 0, %s111
  $region4: #{attention_gate_pallas.3} parent=0 // loop_header_branch
    %13 = sbr.rel (%p11) target = $region8
  $region5: #{attention_gate_pallas.3} parent=0 // loop_body
    %s15 = ssub.s32 %s10, 1
    %s16 = ssub.s32 %s10, 2
    %s23 = sadd.s32 1, %s18
    %p24 = scmp.ge.s32.totalorder %s23, 1
    %s25 = scalar_select %p24, 0, %s23
    %s26 = sadd.s32 1, %s17
    %s27 = scalar_select %p24, %s26, %s17
    %p28 = scmp.ge.s32.totalorder %s27, 2
    %s29 = scalar_select %p28, 0, %s27
    %s30 = ssub.s32 %s17, %s29
    %s31 = ssub.s32 %s18, %s25
    %s32 = sor.u32 %s30, %s31
    %p33 = scmp.eq.s32.totalorder %s32, 0
    %s35 = sadd.s32 %s34, 1
    %s36 = scalar_select %p33, %s34, %s35
    %p39 = pneg %p33
    %p40 = scmp.eq.s32.totalorder %s10, 1
    %p41 = por %p39, %p40
    %p42 = scmp.ne.s32.totalorder %s34, %s37
    %p43 = scmp.eq.s32.totalorder %s10, 0
    %p44 = por %p42, %p43
    %p45 = scmp.ne.s32.totalorder %s34, %s37
    %p46 = scmp.eq.s32.totalorder %s15, 1
    %p47 = por %p45, %p46
    %p48 = scmp.ne.s32.totalorder %s37, %s38
    %p49 = scmp.eq.s32.totalorder %s15, 0
    %p50 = por %p48, %p49
    %p51 = scmp.ne.s32.totalorder %s37, %s38
    %p52 = scmp.eq.s32.totalorder %s16, 1
    %p53 = por %p51, %p52
    %p55 = scmp.ne.s32.totalorder %s38, %s54
    %p56 = scmp.eq.s32.totalorder %s16, 0
    %p57 = por %p55, %p56
    %s59 = sadd.s32 %s58, 1
    %p62 = scmp.eq.s32.totalorder %s10, 1
    %p63 = scmp.ne.s32.totalorder %s58, %s60
    %p64 = scmp.eq.s32.totalorder %s10, 0
    %p65 = por %p63, %p64
    %p66 = scmp.ne.s32.totalorder %s58, %s60
    %p67 = scmp.eq.s32.totalorder %s15, 1
    %p68 = por %p66, %p67
    %p69 = scmp.ne.s32.totalorder %s60, %s61
    %p70 = scmp.eq.s32.totalorder %s15, 0
    %p71 = por %p69, %p70
    %p72 = scmp.ne.s32.totalorder %s60, %s61
    %p73 = scmp.eq.s32.totalorder %s16, 1
    %p74 = por %p72, %p73
    %p76 = scmp.ne.s32.totalorder %s61, %s75
    %p77 = scmp.eq.s32.totalorder %s16, 0
    %p78 = por %p76, %p77
    %s79 = ssub.s32 %s17, %s29
    %p80 = scmp.eq.s32.totalorder %s79, 0
    %s82 = sadd.s32 %s81, 1
    %s83 = scalar_select %p80, %s81, %s82
    %p86 = pneg %p80
    %p87 = scmp.eq.s32.totalorder %s10, 1
    %p88 = por %p86, %p87
    %p89 = scmp.ne.s32.totalorder %s81, %s84
    %p90 = scmp.eq.s32.totalorder %s10, 0
    %p91 = por %p89, %p90
    %p92 = scmp.ne.s32.totalorder %s81, %s84
    %p93 = scmp.eq.s32.totalorder %s15, 1
    %p94 = por %p92, %p93
    %p95 = scmp.ne.s32.totalorder %s84, %s85
    %p96 = scmp.eq.s32.totalorder %s15, 0
    %p97 = por %p95, %p96
    %p98 = scmp.ne.s32.totalorder %s84, %s85
    %p99 = scmp.eq.s32.totalorder %s16, 1
    %p100 = por %p98, %p99
    %p102 = scmp.ne.s32.totalorder %s85, %s101
    %p103 = scmp.eq.s32.totalorder %s16, 0
    %p104 = por %p102, %p103
    %s105 = ssub.s32 %s17, %s29
    %p106 = scmp.eq.s32.totalorder %s105, 0
    %s108 = sadd.s32 %s107, 1
    %s109 = scalar_select %p106, %s107, %s108
    %p112 = pneg %p106
    %p113 = scmp.eq.s32.totalorder %s10, 1
    %p114 = por %p112, %p113
    %p115 = scmp.ne.s32.totalorder %s107, %s110
    %p116 = scmp.eq.s32.totalorder %s10, 0
    %p117 = por %p115, %p116
    %p118 = scmp.ne.s32.totalorder %s107, %s110
    %p119 = scmp.eq.s32.totalorder %s15, 1
    %p120 = por %p118, %p119
    %p121 = scmp.ne.s32.totalorder %s110, %s111
    %p122 = scmp.eq.s32.totalorder %s15, 0
    %p123 = por %p121, %p122
    %p124 = scmp.ne.s32.totalorder %s110, %s111
    %p125 = scmp.eq.s32.totalorder %s16, 1
    %p126 = por %p124, %p125
    %p128 = scmp.ne.s32.totalorder %s111, %s127
    %p129 = scmp.eq.s32.totalorder %s16, 0
    %p130 = por %p128, %p129
    %p131 = scmp.le.s32.totalorder 1, %s10
    %p132 = scmp.lt.s32.totalorder %s10, 3
    %p133 = pnand %p131, %p132
    %p134 = pneg %p133
    // Predicated region
    $region9: #{attention_gate_pallas.3} parent=5 // pred_check
      _
    $region10: #{attention_gate_pallas.3} parent=5 // pred_check_branch
      %136 = sbr.rel (%p133) target = $region12
    $region11: #{attention_gate_pallas.3} parent=5 // pred_region
      %s137 = ssub.s32 %s10, 1
      // Predicated region
      $region13: #{attention_gate_pallas.3} parent=11 // pred_check
        %p138 = pneg %p71
      $region14: #{attention_gate_pallas.3} parent=11 // pred_check_branch
        %140 = sbr.rel (%p138) target = $region16
      $region15: #{attention_gate_pallas.3} parent=11 // pred_region
        _
      $region16: #{attention_gate_pallas.3} parent=11 // pred_fallthru
        _
    $region12: #{attention_gate_pallas.3} parent=5 // pred_fallthru
      _
    %p141 = scmp.lt.s32.totalorder %s10, 2
    // Predicated region
    $region17: #{attention_gate_pallas.3} parent=5 // pred_check
      %p142 = pneg %p141
    $region18: #{attention_gate_pallas.3} parent=5 // pred_check_branch
      %144 = sbr.rel (%p142) target = $region20
    $region19: #{attention_gate_pallas.3} parent=5 // pred_region
      // Predicated region
      $region21: #{attention_gate_pallas.3} parent=19 // pred_check
        %p145 = pneg %p44
      $region22: #{attention_gate_pallas.3} parent=19 // pred_check_branch
        %147 = sbr.rel (%p145) target = $region24
      $region23: #{attention_gate_pallas.3} parent=19 // pred_region
        %s148 = smul.u32 2, %s18
        %p149 = scmp.lt.s32.totalorder %s17, 1
        %s150 = scalar_select %p149, %s17, 1
        %p151 = scmp.lt.s32.totalorder %s148, 1
        %s152 = scalar_select %p151, %s148, 1
        %s153 = smul.addr %s150, 2
        %s154 = sadd.s32 %s152, %s153
        %s155 = smul.addr %s154, 8
        %s156 = scalar_lea.vmem %s0, %s155
        %s157 = smul.u32 2, %s18
      $region24: #{attention_gate_pallas.3} parent=19 // pred_fallthru
        _
    $region20: #{attention_gate_pallas.3} parent=5 // pred_fallthru
      _
    %p158 = scmp.le.s32.totalorder 1, %s10
    %p159 = scmp.lt.s32.totalorder %s10, 3
    %p160 = pnand %p158, %p159
    %p161 = pneg %p160
    // Predicated region
    $region25: #{attention_gate_pallas.3} parent=5 // pred_check
      _
    $region26: #{attention_gate_pallas.3} parent=5 // pred_check_branch
      %163 = sbr.rel (%p160) target = $region28
    $region27: #{attention_gate_pallas.3} parent=5 // pred_region
      %s164 = ssub.s32 %s10, 1
      %s165 = smul.u32 2, %s20
      %p166 = scmp.lt.s32.totalorder %s19, 1
      %s167 = scalar_select %p166, %s19, 1
      %p168 = scmp.lt.s32.totalorder %s165, 1
      %s169 = scalar_select %p168, %s165, 1
      %s170 = smul.addr %s167, 2
      %s171 = sadd.s32 %s169, %s170
      %s172 = smul.addr %s171, 8
      %s173 = scalar_lea.vmem %s0, %s172
      %p174 = pneg %p50
      %p175 = pneg %p47
      %p176 = pneg %p71
      %p177 = pneg %p68
      %p178 = pneg %p97
      %p179 = pneg %p94
      %p180 = scmp.lt.s32.totalorder %s19, 1
      %s181 = scalar_select %p180, %s19, 1
      %s182 = smul.addr %s181, 4
      %s183 = scalar_lea.vmem %s2, %s182
      %p184 = pneg %p123
      %p185 = pneg %p120
      %p186 = scmp.lt.s32.totalorder %s19, 1
      %s187 = scalar_select %p186, %s19, 1
      %s188 = smul.addr %s187, 4
      %s189 = scalar_lea.vmem %s3, %s188
      %s190 = smul.u32 2, %s20
      %p191 = scmp.lt.s32.totalorder %s19, 1
      %s192 = scalar_select %p191, %s19, 1
      %p193 = scmp.lt.s32.totalorder %s190, 1
      %s194 = scalar_select %p193, %s190, 1
      %s195 = smul.addr %s192, 2
      %s196 = sadd.s32 %s194, %s195
      %s197 = smul.addr %s196, 8
      %s198 = scalar_lea.vmem %s0, %s197
      %s199 = smul.u32 2, %s20
      %p200 = scmp.lt.s32.totalorder %s19, 1
      %s201 = scalar_select %p200, %s19, 1
      %s202 = smul.addr %s201, 4
      %s203 = scalar_lea.vmem %s2, %s202
      %p204 = scmp.lt.s32.totalorder %s19, 1
      %s205 = scalar_select %p204, %s19, 1
      %s206 = smul.addr %s205, 4
      %s207 = scalar_lea.vmem %s3, %s206
      %p208 = scmp.eq.s32.totalorder %s20, 0
      // Predicated region
      $region29: #{attention_gate_pallas.3} parent=27 // pred_check
        %p209 = pneg %p208
      $region30: #{attention_gate_pallas.3} parent=27 // pred_check_branch
        %211 = sbr.rel (%p209) target = $region32
      $region31: #{attention_gate_pallas.3} parent=27 // pred_region
        %vm212 = vcmask 3072
        %213 = vst.msk [vmem:[%s203] sm:$0xf] %vm212, 0.0
        %214 = vst.msk [vmem:[%s207] sm:$0xf] %vm212, 0.0
      $region32: #{attention_gate_pallas.3} parent=27 // pred_fallthru
        _
      %v215 = vld [vmem:[%s198] sm:$0xff]
      %v216 = vld [vmem:[%s198 + $0x8] sm:$0xff]
      %v217 = vld [vmem:[%s1] sm:$0xf]
      %vm218 = vcmask 64512
      %v220 = vsel %vm218, %v217, 0
      %222 = vmatprep.subr.mxu0 %v216
      %223 = vmatpush1.msra.mxu0 %v215
      %224 = vmatprep.subr.mxu0 0.0
      %225 = vmatpush1.msra.mxu0 0.0
      %226 = vmatprep.subr.mxu0 0.0
      %227 = vmatpush1.msra.mxu0 0.0
      %228 = vmatprep.subr.mxu0 0.0
      %229 = vmatpush1.msra.mxu0 0.0
      %230 = vmatprep.subr.mxu0 0.0
      %231 = vmatpush1.msra.mxu0 0.0
      %232 = vmatprep.subr.mxu0 0.0
      %233 = vmatpush1.msra.mxu0 0.0
      %234 = vmatprep.subr.mxu0 0.0
      %235 = vmatpush1.msra.mxu0 0.0
      %236 = vmatprep.subr.mxu0 0.0
      %237 = vmatpush1.msra.mxu0 0.0
      %238 = vmatprep.subr.mxu0 0.0
      %239 = vmatpush1.msra.mxu0 0.0
      %240 = vmatprep.subr.mxu0 0.0
      %241 = vmatpush1.msra.mxu0 0.0
      %242 = vmatprep.subr.mxu0 0.0
      %243 = vmatpush1.msra.mxu0 0.0
      %244 = vmatprep.subr.mxu0 0.0
      %245 = vmatpush1.msra.mxu0 0.0
      %246 = vmatprep.subr.mxu0 0.0
      %247 = vmatpush1.msra.mxu0 0.0
      %248 = vmatprep.subr.mxu0 0.0
      %249 = vmatpush1.msra.mxu0 0.0
      %250 = vmatprep.subr.mxu0 0.0
      %251 = vmatpush1.msra.mxu0 0.0
      %252 = vmatprep.subr.mxu0 0.0
      %253 = vmatpush1.msra.mxu0 0.0
      %254 = vmatprep.subr.mxu0 0.0
      %255 = vmatpush1.msra.mxu0 0.0
      %256 = vmatprep.subr.mxu0 0.0
      %257 = vmatpush1.msra.mxu0 0.0
      %258 = vmatprep.subr.mxu0 0.0
      %259 = vmatpush1.msra.mxu0 0.0
      %260 = vmatprep.subr.mxu0 0.0
      %261 = vmatpush1.msra.mxu0 0.0
      %262 = vmatprep.subr.mxu0 0.0
      %263 = vmatpush1.msra.mxu0 0.0
      %264 = vmatprep.subr.mxu0 0.0
      %265 = vmatpush1.msra.mxu0 0.0
      %266 = vmatprep.subr.mxu0 0.0
      %267 = vmatpush1.msra.mxu0 0.0
      %268 = vmatprep.subr.mxu0 0.0
      %269 = vmatpush1.msra.mxu0 0.0
      %270 = vmatprep.subr.mxu0 0.0
      %271 = vmatpush1.msra.mxu0 0.0
      %272 = vmatprep.subr.mxu0 0.0
      %273 = vmatpush1.msra.mxu0 0.0
      %274 = vmatprep.subr.mxu0 0.0
      %275 = vmatpush1.msra.mxu0 0.0
      %276 = vmatprep.subr.mxu0 0.0
      %277 = vmatpush1.msra.mxu0 0.0
      %278 = vmatprep.subr.mxu0 0.0
      %279 = vmatpush1.msra.mxu0 0.0
      %280 = vmatprep.subr.mxu0 0.0
      %281 = vmatpush1.msra.mxu0 0.0
      %282 = vmatprep.subr.mxu0 0.0
      %283 = vmatpush1.msra.mxu0 0.0
      %284 = vmatprep.subr.mxu0 0.0
      %285 = vmatpush1.msra.mxu0 0.0
      %286 = vmatprep.mubr.f32.mxu0 0.0
      %287 = vmatmul.mubr.f32.gmra.mrb[0].mxu0 %v220
      %v288 = vpop.f32.mrb[0].mxu0
      %v289 = vadd.f32 0.0, %v288
      %v290 = vpop.f32.mrb[0].mxu0
      %v291 = vadd.f32 0.0, %v290
      %292 = vdwg.mxu0
      %v293 = vld [vmem:[%s203] sm:$0xf]
      %vm294 = vcmask 1043456
      %v295 = vsel %vm294, %v289, 0.0
      %v296 = vsel %vm294, %v291, 0.0
      %v297 = vadd.f32 %v295, %v296
      %298 = vadd.xlane.f32.xlu0 %v297
      %v299 = vpop.xlane.xlu0 %298
      %v300 = vadd.f32 %v293, %v299
      %vm301 = vcmask 3072
      %302 = vst.msk [vmem:[%s203] sm:$0xf] %vm301, %v300
      %v303 = vld [vmem:[%s207] sm:$0xf]
      %v304 = vmul.f32 %v289, %v289
      %v305 = vmul.f32 %v291, %v291
      %v306 = vsel %vm294, %v304, 0.0
      %v307 = vsel %vm294, %v305, 0.0
      %v308 = vadd.f32 %v306, %v307
      %309 = vadd.xlane.f32.xlu0 %v308
      %v310 = vpop.xlane.xlu0 %309
      %v311 = vadd.f32 %v303, %v310
      %312 = vst.msk [vmem:[%s207] sm:$0xf] %vm301, %v311
      %p313 = scmp.lt.s32.totalorder %s19, 1
      %s314 = scalar_select %p313, %s19, 1
      %s315 = smul.addr %s314, 4
      %s316 = scalar_lea.vmem %s2, %s315
      %p317 = scmp.lt.s32.totalorder %s19, 1
      %s318 = scalar_select %p317, %s19, 1
      %s319 = smul.addr %s318, 4
      %s320 = scalar_lea.vmem %s3, %s319
      // Predicated region
      $region33: #{attention_gate_pallas.3} parent=27 // pred_check
        %p321 = pneg %p94
      $region34: #{attention_gate_pallas.3} parent=27 // pred_check_branch
        %323 = sbr.rel (%p321) target = $region36
      $region35: #{attention_gate_pallas.3} parent=27 // pred_region
        _
      $region36: #{attention_gate_pallas.3} parent=27 // pred_fallthru
        _
      // Predicated region
      $region37: #{attention_gate_pallas.3} parent=27 // pred_check
        %p324 = pneg %p120
      $region38: #{attention_gate_pallas.3} parent=27 // pred_check_branch
        %326 = sbr.rel (%p324) target = $region40
      $region39: #{attention_gate_pallas.3} parent=27 // pred_region
        _
      $region40: #{attention_gate_pallas.3} parent=27 // pred_fallthru
        _
    $region28: #{attention_gate_pallas.3} parent=5 // pred_fallthru
      _
    %p327 = scmp.le.s32.totalorder 2, %s10
    // Predicated region
    $region41: #{attention_gate_pallas.3} parent=5 // pred_check
      %p328 = pneg %p327
    $region42: #{attention_gate_pallas.3} parent=5 // pred_check_branch
      %330 = sbr.rel (%p328) target = $region44
    $region43: #{attention_gate_pallas.3} parent=5 // pred_region
      %s331 = ssub.s32 %s10, 2
      // Predicated region
      $region45: #{attention_gate_pallas.3} parent=43 // pred_check
        %p332 = pneg %p100
      $region46: #{attention_gate_pallas.3} parent=43 // pred_check_branch
        %334 = sbr.rel (%p332) target = $region48
      $region47: #{attention_gate_pallas.3} parent=43 // pred_region
        %p335 = scmp.lt.s32.totalorder %s21, 1
        %s336 = scalar_select %p335, %s21, 1
        %s337 = smul.addr %s336, 4
        %s338 = scalar_lea.vmem %s2, %s337
      $region48: #{attention_gate_pallas.3} parent=43 // pred_fallthru
        _
      // Predicated region
      $region49: #{attention_gate_pallas.3} parent=43 // pred_check
        %p339 = pneg %p126
      $region50: #{attention_gate_pallas.3} parent=43 // pred_check_branch
        %341 = sbr.rel (%p339) target = $region52
      $region51: #{attention_gate_pallas.3} parent=43 // pred_region
        %p342 = scmp.lt.s32.totalorder %s21, 1
        %s343 = scalar_select %p342, %s21, 1
        %s344 = smul.addr %s343, 4
        %s345 = scalar_lea.vmem %s3, %s344
      $region52: #{attention_gate_pallas.3} parent=43 // pred_fallthru
        _
    $region44: #{attention_gate_pallas.3} parent=5 // pred_fallthru
      _
  $region6: #{attention_gate_pallas.3} parent=0 // loop_footer
    %s14 = sadd.s32 1, %s10
  $region7: #{attention_gate_pallas.3} parent=0 // loop_footer_branch
    %9 = sbr.rel target = $region3
  $region8: #{attention_gate_pallas.3} parent=0 // loop_exit
    _

// kernel: attention_gate_pallas.4
$region0: #{attention_gate_pallas.4}
  #allocation0 [shape = 'u32[]', space=smem, size = 0x4, offset = 0x4, fixed_abs, tag = 'smem constant byte address 0x4 - core index']
  #allocation1 [shape = 'u32[144,128]{1,0:T(1,128)}', space=vmem, size = 0x12000, scoped, tag = 'internal scratch']
  %s0 = inlined_call_operand.vmem [shape: f32[2,8,256], index: 0, kind: input, shape index: {}]
  %s1 = inlined_call_operand.vmem [shape: f32[2,4,256], index: 1, kind: input, shape index: {}]
  %s2 = inlined_call_operand.vmem [shape: f32[4,8], index: 2, kind: input, shape index: {}]
  %s3 = inlined_call_operand.vmem [shape: f32[1,4], index: 3, kind: input, shape index: {}]
  %s4 = inlined_call_operand.vmem [shape: f32[4,1], index: 4, kind: input, shape index: {}]
  %s5 = inlined_call_operand.vmem [shape: f32[4,1], index: 5, kind: input, shape index: {}]
  %s6 = inlined_call_operand.vmem [shape: f32[2,1,256], index: 6, kind: output, shape index: {0}]
  %s7 = inlined_call_operand.vmem [shape: f32[2,1,1], index: 7, kind: output, shape index: {1}]
  %s8 = inlined_call_operand.vmem [shape: f32[2,1,1], index: 8, kind: output, shape index: {2}]
  %9 = xla_tuple %s6, %s7, %s8
  %s10 = sld [smem:[#allocation0]]
  $region77: #{attention_gate_pallas.4} parent=0
    _
  %s12 = ssub.s32 1, %s10
  %s13 = scalar_select 0, %s12, %s10
  loop: start=0, step=1, limit=4
  $region2: #{attention_gate_pallas.4} parent=0 // loop_pre_header
    _
  $region3: #{attention_gate_pallas.4} parent=0 // loop_header
    %s15 = sphi 0, %s19
    %p16 = scmp.ge.s32.totalorder %s15, 4
    %s22 = sphi 0, %s34
    %s23 = sphi 0, %s30
    %s24 = sphi 0, %s22
    %s25 = sphi 0, %s23
    %s26 = sphi 0, %s24
    %s27 = sphi 0, %s25
    %s39 = sphi 0, %s41
    %s42 = sphi 0, %s39
    %s43 = sphi 0, %s42
    %s59 = sphi 0, %s43
    %s67 = sphi 0, %s69
    %s70 = sphi 0, %s67
    %s71 = sphi 0, %s70
    %s87 = sphi 0, %s71
    %s91 = sphi 0, %s91
    %s93 = sphi 0, %s91
    %s94 = sphi 0, %s93
    %s108 = sphi 0, %s94
    %s112 = sphi 0, %s112
    %s114 = sphi 0, %s112
    %s115 = sphi 0, %s114
    %s129 = sphi 0, %s115
    %s133 = sphi 0, %s133
    %s135 = sphi 0, %s133
    %s136 = sphi 0, %s135
    %s150 = sphi 0, %s136
    %s154 = sphi 0, %s154
    %s156 = sphi 0, %s154
    %s157 = sphi 0, %s156
    %s171 = sphi 0, %s157
    %s179 = sphi 0, %s181
    %s182 = sphi 0, %s179
    %s183 = sphi 0, %s182
    %s199 = sphi 0, %s183
    %s205 = sphi 0, %s207
    %s208 = sphi 0, %s205
    %s209 = sphi 0, %s208
    %s225 = sphi 0, %s209
    %s231 = sphi 0, %s233
    %s234 = sphi 0, %s231
    %s235 = sphi 0, %s234
    %s251 = sphi 0, %s235
  $region4: #{attention_gate_pallas.4} parent=0 // loop_header_branch
    %18 = sbr.rel (%p16) target = $region8
  $region5: #{attention_gate_pallas.4} parent=0 // loop_body
    %s20 = ssub.s32 %s15, 1
    %s21 = ssub.s32 %s15, 2
    %s28 = sadd.s32 1, %s23
    %p29 = scmp.ge.s32.totalorder %s28, 1
    %s30 = scalar_select %p29, 0, %s28
    %s31 = sadd.s32 1, %s22
    %s32 = scalar_select %p29, %s31, %s22
    %p33 = scmp.ge.s32.totalorder %s32, 2
    %s34 = scalar_select %p33, 0, %s32
    %s35 = ssub.s32 %s22, %s34
    %s36 = ssub.s32 %s23, %s30
    %s37 = sor.u32 %s35, %s36
    %p38 = scmp.eq.s32.totalorder %s37, 0
    %s40 = sadd.s32 %s39, 1
    %s41 = scalar_select %p38, %s39, %s40
    %p44 = pneg %p38
    %p45 = scmp.eq.s32.totalorder %s15, 1
    %p46 = por %p44, %p45
    %p47 = scmp.ne.s32.totalorder %s39, %s42
    %p48 = scmp.eq.s32.totalorder %s15, 0
    %p49 = por %p47, %p48
    %p50 = scmp.ne.s32.totalorder %s39, %s42
    %p51 = scmp.eq.s32.totalorder %s20, 1
    %p52 = por %p50, %p51
    %p53 = scmp.ne.s32.totalorder %s42, %s43
    %p54 = scmp.eq.s32.totalorder %s20, 0
    %p55 = por %p53, %p54
    %p56 = scmp.ne.s32.totalorder %s42, %s43
    %p57 = scmp.eq.s32.totalorder %s21, 1
    %p58 = por %p56, %p57
    %p60 = scmp.ne.s32.totalorder %s43, %s59
    %p61 = scmp.eq.s32.totalorder %s21, 0
    %p62 = por %p60, %p61
    %s63 = ssub.s32 %s22, %s34
    %s64 = ssub.s32 %s23, %s30
    %s65 = sor.u32 %s63, %s64
    %p66 = scmp.eq.s32.totalorder %s65, 0
    %s68 = sadd.s32 %s67, 1
    %s69 = scalar_select %p66, %s67, %s68
    %p72 = pneg %p66
    %p73 = scmp.eq.s32.totalorder %s15, 1
    %p74 = por %p72, %p73
    %p75 = scmp.ne.s32.totalorder %s67, %s70
    %p76 = scmp.eq.s32.totalorder %s15, 0
    %p77 = por %p75, %p76
    %p78 = scmp.ne.s32.totalorder %s67, %s70
    %p79 = scmp.eq.s32.totalorder %s20, 1
    %p80 = por %p78, %p79
    %p81 = scmp.ne.s32.totalorder %s70, %s71
    %p82 = scmp.eq.s32.totalorder %s20, 0
    %p83 = por %p81, %p82
    %p84 = scmp.ne.s32.totalorder %s70, %s71
    %p85 = scmp.eq.s32.totalorder %s21, 1
    %p86 = por %p84, %p85
    %p88 = scmp.ne.s32.totalorder %s71, %s87
    %p89 = scmp.eq.s32.totalorder %s21, 0
    %p90 = por %p88, %p89
    %s92 = sadd.s32 %s91, 1
    %p95 = scmp.eq.s32.totalorder %s15, 1
    %p96 = scmp.ne.s32.totalorder %s91, %s93
    %p97 = scmp.eq.s32.totalorder %s15, 0
    %p98 = por %p96, %p97
    %p99 = scmp.ne.s32.totalorder %s91, %s93
    %p100 = scmp.eq.s32.totalorder %s20, 1
    %p101 = por %p99, %p100
    %p102 = scmp.ne.s32.totalorder %s93, %s94
    %p103 = scmp.eq.s32.totalorder %s20, 0
    %p104 = por %p102, %p103
    %p105 = scmp.ne.s32.totalorder %s93, %s94
    %p106 = scmp.eq.s32.totalorder %s21, 1
    %p107 = por %p105, %p106
    %p109 = scmp.ne.s32.totalorder %s94, %s108
    %p110 = scmp.eq.s32.totalorder %s21, 0
    %p111 = por %p109, %p110
    %s113 = sadd.s32 %s112, 1
    %p116 = scmp.eq.s32.totalorder %s15, 1
    %p117 = scmp.ne.s32.totalorder %s112, %s114
    %p118 = scmp.eq.s32.totalorder %s15, 0
    %p119 = por %p117, %p118
    %p120 = scmp.ne.s32.totalorder %s112, %s114
    %p121 = scmp.eq.s32.totalorder %s20, 1
    %p122 = por %p120, %p121
    %p123 = scmp.ne.s32.totalorder %s114, %s115
    %p124 = scmp.eq.s32.totalorder %s20, 0
    %p125 = por %p123, %p124
    %p126 = scmp.ne.s32.totalorder %s114, %s115
    %p127 = scmp.eq.s32.totalorder %s21, 1
    %p128 = por %p126, %p127
    %p130 = scmp.ne.s32.totalorder %s115, %s129
    %p131 = scmp.eq.s32.totalorder %s21, 0
    %p132 = por %p130, %p131
    %s134 = sadd.s32 %s133, 1
    %p137 = scmp.eq.s32.totalorder %s15, 1
    %p138 = scmp.ne.s32.totalorder %s133, %s135
    %p139 = scmp.eq.s32.totalorder %s15, 0
    %p140 = por %p138, %p139
    %p141 = scmp.ne.s32.totalorder %s133, %s135
    %p142 = scmp.eq.s32.totalorder %s20, 1
    %p143 = por %p141, %p142
    %p144 = scmp.ne.s32.totalorder %s135, %s136
    %p145 = scmp.eq.s32.totalorder %s20, 0
    %p146 = por %p144, %p145
    %p147 = scmp.ne.s32.totalorder %s135, %s136
    %p148 = scmp.eq.s32.totalorder %s21, 1
    %p149 = por %p147, %p148
    %p151 = scmp.ne.s32.totalorder %s136, %s150
    %p152 = scmp.eq.s32.totalorder %s21, 0
    %p153 = por %p151, %p152
    %s155 = sadd.s32 %s154, 1
    %p158 = scmp.eq.s32.totalorder %s15, 1
    %p159 = scmp.ne.s32.totalorder %s154, %s156
    %p160 = scmp.eq.s32.totalorder %s15, 0
    %p161 = por %p159, %p160
    %p162 = scmp.ne.s32.totalorder %s154, %s156
    %p163 = scmp.eq.s32.totalorder %s20, 1
    %p164 = por %p162, %p163
    %p165 = scmp.ne.s32.totalorder %s156, %s157
    %p166 = scmp.eq.s32.totalorder %s20, 0
    %p167 = por %p165, %p166
    %p168 = scmp.ne.s32.totalorder %s156, %s157
    %p169 = scmp.eq.s32.totalorder %s21, 1
    %p170 = por %p168, %p169
    %p172 = scmp.ne.s32.totalorder %s157, %s171
    %p173 = scmp.eq.s32.totalorder %s21, 0
    %p174 = por %p172, %p173
    %s175 = ssub.s32 %s22, %s34
    %s176 = ssub.s32 %s23, %s30
    %s177 = sor.u32 %s175, %s176
    %p178 = scmp.eq.s32.totalorder %s177, 0
    %s180 = sadd.s32 %s179, 1
    %s181 = scalar_select %p178, %s179, %s180
    %p184 = pneg %p178
    %p185 = scmp.eq.s32.totalorder %s15, 1
    %p186 = por %p184, %p185
    %p187 = scmp.ne.s32.totalorder %s179, %s182
    %p188 = scmp.eq.s32.totalorder %s15, 0
    %p189 = por %p187, %p188
    %p190 = scmp.ne.s32.totalorder %s179, %s182
    %p191 = scmp.eq.s32.totalorder %s20, 1
    %p192 = por %p190, %p191
    %p193 = scmp.ne.s32.totalorder %s182, %s183
    %p194 = scmp.eq.s32.totalorder %s20, 0
    %p195 = por %p193, %p194
    %p196 = scmp.ne.s32.totalorder %s182, %s183
    %p197 = scmp.eq.s32.totalorder %s21, 1
    %p198 = por %p196, %p197
    %p200 = scmp.ne.s32.totalorder %s183, %s199
    %p201 = scmp.eq.s32.totalorder %s21, 0
    %p202 = por %p200, %p201
    %s203 = ssub.s32 %s22, %s34
    %p204 = scmp.eq.s32.totalorder %s203, 0
    %s206 = sadd.s32 %s205, 1
    %s207 = scalar_select %p204, %s205, %s206
    %p210 = pneg %p204
    %p211 = scmp.eq.s32.totalorder %s15, 1
    %p212 = por %p210, %p211
    %p213 = scmp.ne.s32.totalorder %s205, %s208
    %p214 = scmp.eq.s32.totalorder %s15, 0
    %p215 = por %p213, %p214
    %p216 = scmp.ne.s32.totalorder %s205, %s208
    %p217 = scmp.eq.s32.totalorder %s20, 1
    %p218 = por %p216, %p217
    %p219 = scmp.ne.s32.totalorder %s208, %s209
    %p220 = scmp.eq.s32.totalorder %s20, 0
    %p221 = por %p219, %p220
    %p222 = scmp.ne.s32.totalorder %s208, %s209
    %p223 = scmp.eq.s32.totalorder %s21, 1
    %p224 = por %p222, %p223
    %p226 = scmp.ne.s32.totalorder %s209, %s225
    %p227 = scmp.eq.s32.totalorder %s21, 0
    %p228 = por %p226, %p227
    %s229 = ssub.s32 %s22, %s34
    %p230 = scmp.eq.s32.totalorder %s229, 0
    %s232 = sadd.s32 %s231, 1
    %s233 = scalar_select %p230, %s231, %s232
    %p236 = pneg %p230
    %p237 = scmp.eq.s32.totalorder %s15, 1
    %p238 = por %p236, %p237
    %p239 = scmp.ne.s32.totalorder %s231, %s234
    %p240 = scmp.eq.s32.totalorder %s15, 0
    %p241 = por %p239, %p240
    %p242 = scmp.ne.s32.totalorder %s231, %s234
    %p243 = scmp.eq.s32.totalorder %s20, 1
    %p244 = por %p242, %p243
    %p245 = scmp.ne.s32.totalorder %s234, %s235
    %p246 = scmp.eq.s32.totalorder %s20, 0
    %p247 = por %p245, %p246
    %p248 = scmp.ne.s32.totalorder %s234, %s235
    %p249 = scmp.eq.s32.totalorder %s21, 1
    %p250 = por %p248, %p249
    %p252 = scmp.ne.s32.totalorder %s235, %s251
    %p253 = scmp.eq.s32.totalorder %s21, 0
    %p254 = por %p252, %p253
    %p255 = scmp.le.s32.totalorder 1, %s15
    %p256 = scmp.lt.s32.totalorder %s15, 3
    %p257 = pnand %p255, %p256
    %p258 = pneg %p257
    // Predicated region
    $region9: #{attention_gate_pallas.4} parent=5 // pred_check
      _
    $region10: #{attention_gate_pallas.4} parent=5 // pred_check_branch
      %260 = sbr.rel (%p257) target = $region12
    $region11: #{attention_gate_pallas.4} parent=5 // pred_region
      %s261 = ssub.s32 %s15, 1
      // Predicated region
      $region13: #{attention_gate_pallas.4} parent=11 // pred_check
        %p262 = pneg %p104
      $region14: #{attention_gate_pallas.4} parent=11 // pred_check_branch
        %264 = sbr.rel (%p262) target = $region16
      $region15: #{attention_gate_pallas.4} parent=11 // pred_region
        _
      $region16: #{attention_gate_pallas.4} parent=11 // pred_fallthru
        _
      // Predicated region
      $region17: #{attention_gate_pallas.4} parent=11 // pred_check
        %p265 = pneg %p125
      $region18: #{attention_gate_pallas.4} parent=11 // pred_check_branch
        %267 = sbr.rel (%p265) target = $region20
      $region19: #{attention_gate_pallas.4} parent=11 // pred_region
        _
      $region20: #{attention_gate_pallas.4} parent=11 // pred_fallthru
        _
      // Predicated region
      $region21: #{attention_gate_pallas.4} parent=11 // pred_check
        %p268 = pneg %p146
      $region22: #{attention_gate_pallas.4} parent=11 // pred_check_branch
        %270 = sbr.rel (%p268) target = $region24
      $region23: #{attention_gate_pallas.4} parent=11 // pred_region
        _
      $region24: #{attention_gate_pallas.4} parent=11 // pred_fallthru
        _
      // Predicated region
      $region25: #{attention_gate_pallas.4} parent=11 // pred_check
        %p271 = pneg %p167
      $region26: #{attention_gate_pallas.4} parent=11 // pred_check_branch
        %273 = sbr.rel (%p271) target = $region28
      $region27: #{attention_gate_pallas.4} parent=11 // pred_region
        _
      $region28: #{attention_gate_pallas.4} parent=11 // pred_fallthru
        _
    $region12: #{attention_gate_pallas.4} parent=5 // pred_fallthru
      _
    %p274 = scmp.lt.s32.totalorder %s15, 2
    // Predicated region
    $region29: #{attention_gate_pallas.4} parent=5 // pred_check
      %p275 = pneg %p274
    $region30: #{attention_gate_pallas.4} parent=5 // pred_check_branch
      %277 = sbr.rel (%p275) target = $region32
    $region31: #{attention_gate_pallas.4} parent=5 // pred_region
      // Predicated region
      $region33: #{attention_gate_pallas.4} parent=31 // pred_check
        %p278 = pneg %p49
      $region34: #{attention_gate_pallas.4} parent=31 // pred_check_branch
        %280 = sbr.rel (%p278) target = $region36
      $region35: #{attention_gate_pallas.4} parent=31 // pred_region
        %s281 = smul.u32 2, %s23
        %p282 = scmp.lt.s32.totalorder %s22, 1
        %s283 = scalar_select %p282, %s22, 1
        %p284 = scmp.lt.s32.totalorder %s281, 1
        %s285 = scalar_select %p284, %s281, 1
        %s286 = smul.addr %s283, 2
        %s287 = sadd.s32 %s285, %s286
        %s288 = smul.addr %s287, 8
        %s289 = scalar_lea.vmem %s0, %s288
        %s290 = smul.u32 2, %s23
      $region36: #{attention_gate_pallas.4} parent=31 // pred_fallthru
        _
      // Predicated region
      $region37: #{attention_gate_pallas.4} parent=31 // pred_check
        %p291 = pneg %p77
      $region38: #{attention_gate_pallas.4} parent=31 // pred_check_branch
        %293 = sbr.rel (%p291) target = $region40
      $region39: #{attention_gate_pallas.4} parent=31 // pred_region
        %s294 = smul.u32 2, %s23
        %p295 = scmp.lt.s32.totalorder %s22, 1
        %s296 = scalar_select %p295, %s22, 1
        %p297 = scmp.lt.s32.totalorder %s294, 1
        %s298 = scalar_select %p297, %s294, 1
        %s299 = smul.addr %s296, 2
        %s300 = sadd.s32 %s298, %s299
        %s301 = smul.addr %s300, 4
        %s302 = scalar_lea.vmem %s1, %s301
        %s303 = smul.u32 2, %s23
      $region40: #{attention_gate_pallas.4} parent=31 // pred_fallthru
        _
    $region32: #{attention_gate_pallas.4} parent=5 // pred_fallthru
      _
    %p304 = scmp.le.s32.totalorder 1, %s15
    %p305 = scmp.lt.s32.totalorder %s15, 3
    %p306 = pnand %p304, %p305
    %p307 = pneg %p306
    // Predicated region
    $region41: #{attention_gate_pallas.4} parent=5 // pred_check
      _
    $region42: #{attention_gate_pallas.4} parent=5 // pred_check_branch
      %309 = sbr.rel (%p306) target = $region44
    $region43: #{attention_gate_pallas.4} parent=5 // pred_region
      %s310 = ssub.s32 %s15, 1
      %s311 = smul.u32 2, %s25
      %p312 = scmp.lt.s32.totalorder %s24, 1
      %s313 = scalar_select %p312, %s24, 1
      %p314 = scmp.lt.s32.totalorder %s311, 1
      %s315 = scalar_select %p314, %s311, 1
      %s316 = smul.addr %s313, 2
      %s317 = sadd.s32 %s315, %s316
      %s318 = smul.addr %s317, 8
      %s319 = scalar_lea.vmem %s0, %s318
      %p320 = pneg %p55
      %p321 = pneg %p52
      %s322 = smul.u32 2, %s25
      %p323 = scmp.lt.s32.totalorder %s24, 1
      %s324 = scalar_select %p323, %s24, 1
      %p325 = scmp.lt.s32.totalorder %s322, 1
      %s326 = scalar_select %p325, %s322, 1
      %s327 = smul.addr %s324, 2
      %s328 = sadd.s32 %s326, %s327
      %s329 = smul.addr %s328, 4
      %s330 = scalar_lea.vmem %s1, %s329
      %p331 = pneg %p83
      %p332 = pneg %p80
      %p333 = pneg %p104
      %p334 = pneg %p101
      %p335 = pneg %p125
      %p336 = pneg %p122
      %p337 = pneg %p146
      %p338 = pneg %p143
      %p339 = pneg %p167
      %p340 = pneg %p164
      %p341 = pneg %p195
      %p342 = pneg %p192
      %s343 = smul.u32 2, %s25
      %p344 = scmp.lt.s32.totalorder %s24, 1
      %s345 = scalar_select %p344, %s24, 1
      %p346 = scmp.lt.s32.totalorder %s343, 1
      %s347 = scalar_select %p346, %s343, 1
      %s348 = smul.addr %s345, 2
      %s349 = sadd.s32 %s347, %s348
      %s350 = scalar_lea.vmem %s6, %s349
      %p351 = pneg %p221
      %p352 = pneg %p218
      %p353 = scmp.lt.s32.totalorder %s24, 1
      %s354 = scalar_select %p353, %s24, 1
      %s355 = scalar_lea.vmem %s7, %s354
      %p356 = pneg %p247
      %p357 = pneg %p244
      %p358 = scmp.lt.s32.totalorder %s24, 1
      %s359 = scalar_select %p358, %s24, 1
      %s360 = scalar_lea.vmem %s8, %s359
      %s361 = smul.u32 2, %s25
      %p362 = scmp.lt.s32.totalorder %s24, 1
      %s363 = scalar_select %p362, %s24, 1
      %p364 = scmp.lt.s32.totalorder %s361, 1
      %s365 = scalar_select %p364, %s361, 1
      %s366 = smul.addr %s363, 2
      %s367 = sadd.s32 %s365, %s366
      %s368 = smul.addr %s367, 8
      %s369 = scalar_lea.vmem %s0, %s368
      %s370 = smul.u32 2, %s25
      %s371 = smul.u32 2, %s25
      %p372 = scmp.lt.s32.totalorder %s24, 1
      %s373 = scalar_select %p372, %s24, 1
      %p374 = scmp.lt.s32.totalorder %s371, 1
      %s375 = scalar_select %p374, %s371, 1
      %s376 = smul.addr %s373, 2
      %s377 = sadd.s32 %s375, %s376
      %s378 = smul.addr %s377, 4
      %s379 = scalar_lea.vmem %s1, %s378
      %s380 = smul.u32 2, %s25
      %s381 = smul.u32 2, %s25
      %p382 = scmp.lt.s32.totalorder %s24, 1
      %s383 = scalar_select %p382, %s24, 1
      %p384 = scmp.lt.s32.totalorder %s381, 1
      %s385 = scalar_select %p384, %s381, 1
      %s386 = smul.addr %s383, 2
      %s387 = sadd.s32 %s385, %s386
      %s388 = scalar_lea.vmem %s6, %s387
      %s389 = smul.u32 2, %s25
      %p390 = scmp.lt.s32.totalorder %s24, 1
      %s391 = scalar_select %p390, %s24, 1
      %s392 = scalar_lea.vmem %s7, %s391
      %p393 = scmp.lt.s32.totalorder %s24, 1
      %s394 = scalar_select %p393, %s24, 1
      %s395 = scalar_lea.vmem %s8, %s394
      %p396 = scmp.eq.s32.totalorder %s25, 0
      // Predicated region
      $region45: #{attention_gate_pallas.4} parent=43 // pred_check
        %p397 = pneg %p396
      $region46: #{attention_gate_pallas.4} parent=43 // pred_check_branch
        %399 = sbr.rel (%p397) target = $region48
      $region47: #{attention_gate_pallas.4} parent=43 // pred_region
        %vm400 = vcmask 0
        %401 = vst.msk [vmem:[%s392] sm:$0x1] %vm400, 0.0
        %402 = vst.msk [vmem:[%s395] sm:$0x1] %vm400, 0.0
      $region48: #{attention_gate_pallas.4} parent=43 // pred_fallthru
        _
      %v403 = vld [vmem:[%s369] sm:$0xff]
      %v404 = vld [vmem:[%s369 + $0x8] sm:$0xff]
      %v405 = vld [vmem:[%s2] sm:$0xf]
      %vm406 = vcmask 64512
      %v408 = vsel %vm406, %v405, 0
      %410 = vmatprep.subr.mxu0 %v404
      %411 = vmatpush1.msra.mxu0 %v403
      %412 = vmatprep.subr.mxu0 0.0
      %413 = vmatpush1.msra.mxu0 0.0
      %414 = vmatprep.subr.mxu0 0.0
      %415 = vmatpush1.msra.mxu0 0.0
      %416 = vmatprep.subr.mxu0 0.0
      %417 = vmatpush1.msra.mxu0 0.0
      %418 = vmatprep.subr.mxu0 0.0
      %419 = vmatpush1.msra.mxu0 0.0
      %420 = vmatprep.subr.mxu0 0.0
      %421 = vmatpush1.msra.mxu0 0.0
      %422 = vmatprep.subr.mxu0 0.0
      %423 = vmatpush1.msra.mxu0 0.0
      %424 = vmatprep.subr.mxu0 0.0
      %425 = vmatpush1.msra.mxu0 0.0
      %426 = vmatprep.subr.mxu0 0.0
      %427 = vmatpush1.msra.mxu0 0.0
      %428 = vmatprep.subr.mxu0 0.0
      %429 = vmatpush1.msra.mxu0 0.0
      %430 = vmatprep.subr.mxu0 0.0
      %431 = vmatpush1.msra.mxu0 0.0
      %432 = vmatprep.subr.mxu0 0.0
      %433 = vmatpush1.msra.mxu0 0.0
      %434 = vmatprep.subr.mxu0 0.0
      %435 = vmatpush1.msra.mxu0 0.0
      %436 = vmatprep.subr.mxu0 0.0
      %437 = vmatpush1.msra.mxu0 0.0
      %438 = vmatprep.subr.mxu0 0.0
      %439 = vmatpush1.msra.mxu0 0.0
      %440 = vmatprep.subr.mxu0 0.0
      %441 = vmatpush1.msra.mxu0 0.0
      %442 = vmatprep.subr.mxu0 0.0
      %443 = vmatpush1.msra.mxu0 0.0
      %444 = vmatprep.subr.mxu0 0.0
      %445 = vmatpush1.msra.mxu0 0.0
      %446 = vmatprep.subr.mxu0 0.0
      %447 = vmatpush1.msra.mxu0 0.0
      %448 = vmatprep.subr.mxu0 0.0
      %449 = vmatpush1.msra.mxu0 0.0
      %450 = vmatprep.subr.mxu0 0.0
      %451 = vmatpush1.msra.mxu0 0.0
      %452 = vmatprep.subr.mxu0 0.0
      %453 = vmatpush1.msra.mxu0 0.0
      %454 = vmatprep.subr.mxu0 0.0
      %455 = vmatpush1.msra.mxu0 0.0
      %456 = vmatprep.subr.mxu0 0.0
      %457 = vmatpush1.msra.mxu0 0.0
      %458 = vmatprep.subr.mxu0 0.0
      %459 = vmatpush1.msra.mxu0 0.0
      %460 = vmatprep.subr.mxu0 0.0
      %461 = vmatpush1.msra.mxu0 0.0
      %462 = vmatprep.subr.mxu0 0.0
      %463 = vmatpush1.msra.mxu0 0.0
      %464 = vmatprep.subr.mxu0 0.0
      %465 = vmatpush1.msra.mxu0 0.0
      %466 = vmatprep.subr.mxu0 0.0
      %467 = vmatpush1.msra.mxu0 0.0
      %468 = vmatprep.subr.mxu0 0.0
      %469 = vmatpush1.msra.mxu0 0.0
      %470 = vmatprep.subr.mxu0 0.0
      %471 = vmatpush1.msra.mxu0 0.0
      %472 = vmatprep.subr.mxu0 0.0
      %473 = vmatpush1.msra.mxu0 0.0
      %474 = vmatprep.mubr.f32.mxu0 0.0
      %475 = vmatmul.mubr.f32.gmra.mrb[0].mxu0 %v408
      %v476 = vpop.f32.mrb[0].mxu0
      %v477 = vadd.f32 0.0, %v476
      %v478 = vpop.f32.mrb[0].mxu0
      %v479 = vadd.f32 0.0, %v478
      %480 = vdwg.mxu0
      %v481 = vld [vmem:[%s4] sm:$0xf]
      %483 = vset.pattern.permute.xlu0 0
      %484 = vperm.xlu0 %483, %v481
      %v485 = vpop.permute.xlu0 %484
      %v487 = vmul.f32 %v477, %v485
      %v488 = vmul.f32 %v479, %v485
      %v489 = vld [vmem:[%s5] sm:$0xf]
      %491 = vset.pattern.permute.xlu0 0
      %492 = vperm.xlu0 %491, %v489
      %v493 = vpop.permute.xlu0 %492
      %v495 = vadd.f32 %v487, %v493
      %v496 = vadd.f32 %v488, %v493
      %v497 = vld [vmem:[%s379] sm:$0xff]
      %v499 = vcombine.high %v497, %v497
      %v501 = vadd.f32 %v495, %v497
      %v502 = vadd.f32 %v496, %v499
      %v503 = vmax.f32 %v501, 0.0
      %v504 = vmax.f32 %v502, 0.0
      %v505 = vld [vmem:[%s3] sm:$0x1]
      %vm506 = vcmask 31744
      %v508 = vsel %vm506, %v505, 0
      %vm510 = vcmask 1043456
      %v512 = vsel %vm510, %v503, 0
      %v515 = vsel %vm510, %v504, 0
      %517 = vmatprep.subr.mxu0 %v515
      %518 = vmatpush1.msra.mxu0 %v512
      %519 = vmatprep.subr.mxu0 0.0
      %520 = vmatpush1.msra.mxu0 0.0
      %521 = vmatprep.subr.mxu0 0.0
      %522 = vmatpush1.msra.mxu0 0.0
      %523 = vmatprep.subr.mxu0 0.0
      %524 = vmatpush1.msra.mxu0 0.0
      %525 = vmatprep.subr.mxu0 0.0
      %526 = vmatpush1.msra.mxu0 0.0
      %527 = vmatprep.subr.mxu0 0.0
      %528 = vmatpush1.msra.mxu0 0.0
      %529 = vmatprep.subr.mxu0 0.0
      %530 = vmatpush1.msra.mxu0 0.0
      %531 = vmatprep.subr.mxu0 0.0
      %532 = vmatpush1.msra.mxu0 0.0
      %533 = vmatprep.subr.mxu0 0.0
      %534 = vmatpush1.msra.mxu0 0.0
      %535 = vmatprep.subr.mxu0 0.0
      %536 = vmatpush1.msra.mxu0 0.0
      %537 = vmatprep.subr.mxu0 0.0
      %538 = vmatpush1.msra.mxu0 0.0
      %539 = vmatprep.subr.mxu0 0.0
      %540 = vmatpush1.msra.mxu0 0.0
      %541 = vmatprep.subr.mxu0 0.0
      %542 = vmatpush1.msra.mxu0 0.0
      %543 = vmatprep.subr.mxu0 0.0
      %544 = vmatpush1.msra.mxu0 0.0
      %545 = vmatprep.subr.mxu0 0.0
      %546 = vmatpush1.msra.mxu0 0.0
      %547 = vmatprep.subr.mxu0 0.0
      %548 = vmatpush1.msra.mxu0 0.0
      %549 = vmatprep.subr.mxu0 0.0
      %550 = vmatpush1.msra.mxu0 0.0
      %551 = vmatprep.subr.mxu0 0.0
      %552 = vmatpush1.msra.mxu0 0.0
      %553 = vmatprep.subr.mxu0 0.0
      %554 = vmatpush1.msra.mxu0 0.0
      %555 = vmatprep.subr.mxu0 0.0
      %556 = vmatpush1.msra.mxu0 0.0
      %557 = vmatprep.subr.mxu0 0.0
      %558 = vmatpush1.msra.mxu0 0.0
      %559 = vmatprep.subr.mxu0 0.0
      %560 = vmatpush1.msra.mxu0 0.0
      %561 = vmatprep.subr.mxu0 0.0
      %562 = vmatpush1.msra.mxu0 0.0
      %563 = vmatprep.subr.mxu0 0.0
      %564 = vmatpush1.msra.mxu0 0.0
      %565 = vmatprep.subr.mxu0 0.0
      %566 = vmatpush1.msra.mxu0 0.0
      %567 = vmatprep.subr.mxu0 0.0
      %568 = vmatpush1.msra.mxu0 0.0
      %569 = vmatprep.subr.mxu0 0.0
      %570 = vmatpush1.msra.mxu0 0.0
      %571 = vmatprep.subr.mxu0 0.0
      %572 = vmatpush1.msra.mxu0 0.0
      %573 = vmatprep.subr.mxu0 0.0
      %574 = vmatpush1.msra.mxu0 0.0
      %575 = vmatprep.subr.mxu0 0.0
      %576 = vmatpush1.msra.mxu0 0.0
      %577 = vmatprep.subr.mxu0 0.0
      %578 = vmatpush1.msra.mxu0 0.0
      %579 = vmatprep.subr.mxu0 0.0
      %580 = vmatpush1.msra.mxu0 0.0
      %581 = vmatprep.mubr.f32.mxu0 0.0
      %582 = vmatmul.mubr.f32.gmra.mrb[0].mxu0 %v508
      %v583 = vpop.f32.mrb[0].mxu0
      %v584 = vadd.f32 0.0, %v583
      %v585 = vpop.f32.mrb[0].mxu0
      %v586 = vadd.f32 0.0, %v585
      %587 = vdwg.mxu0
      %v590 = vcombine.low %v584, %v586
      %v592 = vunpack.c.l.s4 1966171168
      %v593 = vunpack.c.0.s8 %v592
      %v594 = vlaneseq
      %v595 = vshrl.u32 %v594, 7
      %v596 = vsub.s32 %v593, %v595
      %v597 = vrot.slane %v590, %v596
      %v599 = vunpack.c.l.s4 1966171168
      %v600 = vunpack.c.0.s8 %v599
      %v601 = vlaneseq
      %v602 = vshrl.u32 %v601, 7
      %v603 = vsub.s32 %v600, %v602
      %v604 = vrot.slane %v597, %v603
      %v606 = vlaneseq
      %vm607 = vcmp.ge.s32.totalorder %v606, 0
      %vm608 = vcmp.lt.s32.totalorder %v606, 256
      %vm609 = vmand %vm607, %vm608
      %610 = vst.msk [vmem:[%s388] sm:$0x3] %vm609, %v604
      %v611 = vld [vmem:[%s392] sm:$0x1]
      %vm612 = vcmask 1040384
      %v613 = vsel %vm612, %v584, 0.0
      %v614 = vsel %vm612, %v586, 0.0
      %v615 = vadd.f32 %v613, %v614
      %616 = vadd.xlane.f32.xlu0 %v615
      %v617 = vpop.xlane.xlu0 %616
      %v618 = vadd.f32 %v611, %v617
      %vm619 = vcmask 0
      %620 = vst.msk [vmem:[%s392] sm:$0x1] %vm619, %v618
      %v621 = vld [vmem:[%s395] sm:$0x1]
      %v622 = vmul.f32 %v584, %v584
      %v623 = vmul.f32 %v586, %v586
      %v624 = vsel %vm612, %v622, 0.0
      %v625 = vsel %vm612, %v623, 0.0
      %v626 = vadd.f32 %v624, %v625
      %627 = vadd.xlane.f32.xlu0 %v626
      %v628 = vpop.xlane.xlu0 %627
      %v629 = vadd.f32 %v621, %v628
      %630 = vst.msk [vmem:[%s395] sm:$0x1] %vm619, %v629
      %s631 = smul.u32 2, %s25
      %p632 = scmp.lt.s32.totalorder %s24, 1
      %s633 = scalar_select %p632, %s24, 1
      %p634 = scmp.lt.s32.totalorder %s631, 1
      %s635 = scalar_select %p634, %s631, 1
      %s636 = smul.addr %s633, 2
      %s637 = sadd.s32 %s635, %s636
      %s638 = scalar_lea.vmem %s6, %s637
      %p639 = scmp.lt.s32.totalorder %s24, 1
      %s640 = scalar_select %p639, %s24, 1
      %s641 = scalar_lea.vmem %s7, %s640
      %p642 = scmp.lt.s32.totalorder %s24, 1
      %s643 = scalar_select %p642, %s24, 1
      %s644 = scalar_lea.vmem %s8, %s643
      // Predicated region
      $region49: #{attention_gate_pallas.4} parent=43 // pred_check
        %p645 = pneg %p192
      $region50: #{attention_gate_pallas.4} parent=43 // pred_check_branch
        %647 = sbr.rel (%p645) target = $region52
      $region51: #{attention_gate_pallas.4} parent=43 // pred_region
        %s648 = smul.u32 2, %s25
      $region52: #{attention_gate_pallas.4} parent=43 // pred_fallthru
        _
      // Predicated region
      $region53: #{attention_gate_pallas.4} parent=43 // pred_check
        %p649 = pneg %p218
      $region54: #{attention_gate_pallas.4} parent=43 // pred_check_branch
        %651 = sbr.rel (%p649) target = $region56
      $region55: #{attention_gate_pallas.4} parent=43 // pred_region
        _
      $region56: #{attention_gate_pallas.4} parent=43 // pred_fallthru
        _
      // Predicated region
      $region57: #{attention_gate_pallas.4} parent=43 // pred_check
        %p652 = pneg %p244
      $region58: #{attention_gate_pallas.4} parent=43 // pred_check_branch
        %654 = sbr.rel (%p652) target = $region60
      $region59: #{attention_gate_pallas.4} parent=43 // pred_region
        _
      $region60: #{attention_gate_pallas.4} parent=43 // pred_fallthru
        _
    $region44: #{attention_gate_pallas.4} parent=5 // pred_fallthru
      _
    %p655 = scmp.le.s32.totalorder 2, %s15
    // Predicated region
    $region61: #{attention_gate_pallas.4} parent=5 // pred_check
      %p656 = pneg %p655
    $region62: #{attention_gate_pallas.4} parent=5 // pred_check_branch
      %658 = sbr.rel (%p656) target = $region64
    $region63: #{attention_gate_pallas.4} parent=5 // pred_region
      %s659 = ssub.s32 %s15, 2
      // Predicated region
      $region65: #{attention_gate_pallas.4} parent=63 // pred_check
        %p660 = pneg %p198
      $region66: #{attention_gate_pallas.4} parent=63 // pred_check_branch
        %662 = sbr.rel (%p660) target = $region68
      $region67: #{attention_gate_pallas.4} parent=63 // pred_region
        %s663 = smul.u32 2, %s27
        %p664 = scmp.lt.s32.totalorder %s26, 1
        %s665 = scalar_select %p664, %s26, 1
        %p666 = scmp.lt.s32.totalorder %s663, 1
        %s667 = scalar_select %p666, %s663, 1
        %s668 = smul.addr %s665, 2
        %s669 = sadd.s32 %s667, %s668
        %s670 = scalar_lea.vmem %s6, %s669
      $region68: #{attention_gate_pallas.4} parent=63 // pred_fallthru
        _
      // Predicated region
      $region69: #{attention_gate_pallas.4} parent=63 // pred_check
        %p671 = pneg %p224
      $region70: #{attention_gate_pallas.4} parent=63 // pred_check_branch
        %673 = sbr.rel (%p671) target = $region72
      $region71: #{attention_gate_pallas.4} parent=63 // pred_region
        %p674 = scmp.lt.s32.totalorder %s26, 1
        %s675 = scalar_select %p674, %s26, 1
        %s676 = scalar_lea.vmem %s7, %s675
      $region72: #{attention_gate_pallas.4} parent=63 // pred_fallthru
        _
      // Predicated region
      $region73: #{attention_gate_pallas.4} parent=63 // pred_check
        %p677 = pneg %p250
      $region74: #{attention_gate_pallas.4} parent=63 // pred_check_branch
        %679 = sbr.rel (%p677) target = $region76
      $region75: #{attention_gate_pallas.4} parent=63 // pred_region
        %p680 = scmp.lt.s32.totalorder %s26, 1
        %s681 = scalar_select %p680, %s26, 1
        %s682 = scalar_lea.vmem %s8, %s681
      $region76: #{attention_gate_pallas.4} parent=63 // pred_fallthru
        _
    $region64: #{attention_gate_pallas.4} parent=5 // pred_fallthru
      _
  $region6: #{attention_gate_pallas.4} parent=0 // loop_footer
    %s19 = sadd.s32 1, %s15
  $region7: #{attention_gate_pallas.4} parent=0 // loop_footer_branch
    %14 = sbr.rel target = $region3
  $region8: #{attention_gate_pallas.4} parent=0 // loop_exit
    _

// kernel: attention_gate_pallas.5
$region0: #{attention_gate_pallas.5}
  #allocation0 [shape = 'u32[]', space=smem, size = 0x4, offset = 0x4, fixed_abs, tag = 'smem constant byte address 0x4 - core index']
  #allocation1 [shape = 'u32[144,128]{1,0:T(1,128)}', space=vmem, size = 0x12000, scoped, tag = 'internal scratch']
  %s0 = inlined_call_operand.vmem [shape: f32[2,4,256], index: 0, kind: input, shape index: {}]
  %s1 = inlined_call_operand.vmem [shape: f32[2,1,256], index: 1, kind: input, shape index: {}]
  %s2 = inlined_call_operand.vmem [shape: f32[2], index: 2, kind: input, shape index: {}]
  %s3 = inlined_call_operand.vmem [shape: f32[2,4,256], index: 3, kind: output, shape index: {}]
  %s4 = sld [smem:[#allocation0]]
  $region49: #{attention_gate_pallas.5} parent=0
    _
  %s6 = ssub.s32 1, %s4
  %s7 = scalar_select 0, %s6, %s4
  $region1: #{attention_gate_pallas.5} parent=0
    #allocation2 [shape = 'u8[512]{0}', space=smem, size = 0x200, scoped, tag = 'input window, operand 2, single buffered']
    #allocation3 [shape = 's32[2]{0}', space=sflag, size = 0x8, scoped, tag = 'scoped memory for attention_gate_pallas.5']
    %8 = vsyncpa [#allocation3], 0
    loop: start=0, step=1, limit=4
    $region2: #{attention_gate_pallas.5} parent=1 // loop_pre_header
      _
    $region3: #{attention_gate_pallas.5} parent=1 // loop_header
      %s10 = sphi 0, %s14
      %p11 = scmp.ge.s32.totalorder %s10, 4
      %s17 = sphi 0, %s29
      %s18 = sphi 0, %s25
      %s19 = sphi 0, %s17
      %s20 = sphi 0, %s18
      %s21 = sphi 0, %s19
      %s22 = sphi 0, %s20
      %s34 = sphi 0, %s36
      %s37 = sphi 0, %s34
      %s38 = sphi 0, %s37
      %s54 = sphi 0, %s38
      %s62 = sphi 0, %s64
      %s65 = sphi 0, %s62
      %s66 = sphi 0, %s65
      %s82 = sphi 0, %s66
      %s86 = sphi 0, %s86
      %s88 = sphi 0, %s86
      %s89 = sphi 0, %s88
      %s103 = sphi 0, %s89
      %s111 = sphi 0, %s113
      %s114 = sphi 0, %s111
      %s115 = sphi 0, %s114
      %s131 = sphi 0, %s115
    $region4: #{attention_gate_pallas.5} parent=1 // loop_header_branch
      %13 = sbr.rel (%p11) target = $region8
    $region5: #{attention_gate_pallas.5} parent=1 // loop_body
      %s15 = ssub.s32 %s10, 1
      %s16 = ssub.s32 %s10, 2
      %s23 = sadd.s32 1, %s18
      %p24 = scmp.ge.s32.totalorder %s23, 1
      %s25 = scalar_select %p24, 0, %s23
      %s26 = sadd.s32 1, %s17
      %s27 = scalar_select %p24, %s26, %s17
      %p28 = scmp.ge.s32.totalorder %s27, 2
      %s29 = scalar_select %p28, 0, %s27
      %s30 = ssub.s32 %s17, %s29
      %s31 = ssub.s32 %s18, %s25
      %s32 = sor.u32 %s30, %s31
      %p33 = scmp.eq.s32.totalorder %s32, 0
      %s35 = sadd.s32 %s34, 1
      %s36 = scalar_select %p33, %s34, %s35
      %p39 = pneg %p33
      %p40 = scmp.eq.s32.totalorder %s10, 1
      %p41 = por %p39, %p40
      %p42 = scmp.ne.s32.totalorder %s34, %s37
      %p43 = scmp.eq.s32.totalorder %s10, 0
      %p44 = por %p42, %p43
      %p45 = scmp.ne.s32.totalorder %s34, %s37
      %p46 = scmp.eq.s32.totalorder %s15, 1
      %p47 = por %p45, %p46
      %p48 = scmp.ne.s32.totalorder %s37, %s38
      %p49 = scmp.eq.s32.totalorder %s15, 0
      %p50 = por %p48, %p49
      %p51 = scmp.ne.s32.totalorder %s37, %s38
      %p52 = scmp.eq.s32.totalorder %s16, 1
      %p53 = por %p51, %p52
      %p55 = scmp.ne.s32.totalorder %s38, %s54
      %p56 = scmp.eq.s32.totalorder %s16, 0
      %p57 = por %p55, %p56
      %s58 = ssub.s32 %s17, %s29
      %s59 = ssub.s32 %s18, %s25
      %s60 = sor.u32 %s58, %s59
      %p61 = scmp.eq.s32.totalorder %s60, 0
      %s63 = sadd.s32 %s62, 1
      %s64 = scalar_select %p61, %s62, %s63
      %p67 = pneg %p61
      %p68 = scmp.eq.s32.totalorder %s10, 1
      %p69 = por %p67, %p68
      %p70 = scmp.ne.s32.totalorder %s62, %s65
      %p71 = scmp.eq.s32.totalorder %s10, 0
      %p72 = por %p70, %p71
      %p73 = scmp.ne.s32.totalorder %s62, %s65
      %p74 = scmp.eq.s32.totalorder %s15, 1
      %p75 = por %p73, %p74
      %p76 = scmp.ne.s32.totalorder %s65, %s66
      %p77 = scmp.eq.s32.totalorder %s15, 0
      %p78 = por %p76, %p77
      %p79 = scmp.ne.s32.totalorder %s65, %s66
      %p80 = scmp.eq.s32.totalorder %s16, 1
      %p81 = por %p79, %p80
      %p83 = scmp.ne.s32.totalorder %s66, %s82
      %p84 = scmp.eq.s32.totalorder %s16, 0
      %p85 = por %p83, %p84
      %s87 = sadd.s32 %s86, 1
      %p90 = scmp.eq.s32.totalorder %s10, 1
      %p91 = scmp.ne.s32.totalorder %s86, %s88
      %p92 = scmp.eq.s32.totalorder %s10, 0
      %p93 = por %p91, %p92
      %p94 = scmp.ne.s32.totalorder %s86, %s88
      %p95 = scmp.eq.s32.totalorder %s15, 1
      %p96 = por %p94, %p95
      %p97 = scmp.ne.s32.totalorder %s88, %s89
      %p98 = scmp.eq.s32.totalorder %s15, 0
      %p99 = por %p97, %p98
      %p100 = scmp.ne.s32.totalorder %s88, %s89
      %p101 = scmp.eq.s32.totalorder %s16, 1
      %p102 = por %p100, %p101
      %p104 = scmp.ne.s32.totalorder %s89, %s103
      %p105 = scmp.eq.s32.totalorder %s16, 0
      %p106 = por %p104, %p105
      %s107 = ssub.s32 %s17, %s29
      %s108 = ssub.s32 %s18, %s25
      %s109 = sor.u32 %s107, %s108
      %p110 = scmp.eq.s32.totalorder %s109, 0
      %s112 = sadd.s32 %s111, 1
      %s113 = scalar_select %p110, %s111, %s112
      %p116 = pneg %p110
      %p117 = scmp.eq.s32.totalorder %s10, 1
      %p118 = por %p116, %p117
      %p119 = scmp.ne.s32.totalorder %s111, %s114
      %p120 = scmp.eq.s32.totalorder %s10, 0
      %p121 = por %p119, %p120
      %p122 = scmp.ne.s32.totalorder %s111, %s114
      %p123 = scmp.eq.s32.totalorder %s15, 1
      %p124 = por %p122, %p123
      %p125 = scmp.ne.s32.totalorder %s114, %s115
      %p126 = scmp.eq.s32.totalorder %s15, 0
      %p127 = por %p125, %p126
      %p128 = scmp.ne.s32.totalorder %s114, %s115
      %p129 = scmp.eq.s32.totalorder %s16, 1
      %p130 = por %p128, %p129
      %p132 = scmp.ne.s32.totalorder %s115, %s131
      %p133 = scmp.eq.s32.totalorder %s16, 0
      %p134 = por %p132, %p133
      %p135 = scmp.le.s32.totalorder 1, %s10
      %p136 = scmp.lt.s32.totalorder %s10, 3
      %p137 = pnand %p135, %p136
      %p138 = pneg %p137
      // Predicated region
      $region9: #{attention_gate_pallas.5} parent=5 // pred_check
        _
      $region10: #{attention_gate_pallas.5} parent=5 // pred_check_branch
        %140 = sbr.rel (%p137) target = $region12
      $region11: #{attention_gate_pallas.5} parent=5 // pred_region
        %s141 = ssub.s32 %s10, 1
        // Predicated region
        $region13: #{attention_gate_pallas.5} parent=11 // pred_check
          %p142 = pneg %p99
        $region14: #{attention_gate_pallas.5} parent=11 // pred_check_branch
          %144 = sbr.rel (%p142) target = $region16
        $region15: #{attention_gate_pallas.5} parent=11 // pred_region
          %s146 = ssub.s32 16, 16
          %147 = vsyncadd [#allocation3], %s146
          %s149 = sshll.u32 %s2, 4
          %s150 = int_to_ptr.vmem [resolvable:$true] %s149
          %152 = dma.vmem_to_smem %s150, 16, [#allocation2], [#allocation3]
        $region16: #{attention_gate_pallas.5} parent=11 // pred_fallthru
          _
      $region12: #{attention_gate_pallas.5} parent=5 // pred_fallthru
        _
      %p153 = scmp.lt.s32.totalorder %s10, 2
      // Predicated region
      $region17: #{attention_gate_pallas.5} parent=5 // pred_check
        %p154 = pneg %p153
      $region18: #{attention_gate_pallas.5} parent=5 // pred_check_branch
        %156 = sbr.rel (%p154) target = $region20
      $region19: #{attention_gate_pallas.5} parent=5 // pred_region
        // Predicated region
        $region21: #{attention_gate_pallas.5} parent=19 // pred_check
          %p157 = pneg %p44
        $region22: #{attention_gate_pallas.5} parent=19 // pred_check_branch
          %159 = sbr.rel (%p157) target = $region24
        $region23: #{attention_gate_pallas.5} parent=19 // pred_region
          %s160 = smul.u32 2, %s18
          %p161 = scmp.lt.s32.totalorder %s17, 1
          %s162 = scalar_select %p161, %s17, 1
          %p163 = scmp.lt.s32.totalorder %s160, 1
          %s164 = scalar_select %p163, %s160, 1
          %s165 = smul.addr %s162, 2
          %s166 = sadd.s32 %s164, %s165
          %s167 = smul.addr %s166, 4
          %s168 = scalar_lea.vmem %s0, %s167
          %s169 = smul.u32 2, %s18
        $region24: #{attention_gate_pallas.5} parent=19 // pred_fallthru
          _
        // Predicated region
        $region25: #{attention_gate_pallas.5} parent=19 // pred_check
          %p170 = pneg %p72
        $region26: #{attention_gate_pallas.5} parent=19 // pred_check_branch
          %172 = sbr.rel (%p170) target = $region28
        $region27: #{attention_gate_pallas.5} parent=19 // pred_region
          %s173 = smul.u32 2, %s18
          %p174 = scmp.lt.s32.totalorder %s17, 1
          %s175 = scalar_select %p174, %s17, 1
          %p176 = scmp.lt.s32.totalorder %s173, 1
          %s177 = scalar_select %p176, %s173, 1
          %s178 = smul.addr %s175, 2
          %s179 = sadd.s32 %s177, %s178
          %s180 = scalar_lea.vmem %s1, %s179
          %s181 = smul.u32 2, %s18
        $region28: #{attention_gate_pallas.5} parent=19 // pred_fallthru
          _
      $region20: #{attention_gate_pallas.5} parent=5 // pred_fallthru
        _
      %p182 = scmp.le.s32.totalorder 1, %s10
      %p183 = scmp.lt.s32.totalorder %s10, 3
      %p184 = pnand %p182, %p183
      %p185 = pneg %p184
      // Predicated region
      $region29: #{attention_gate_pallas.5} parent=5 // pred_check
        _
      $region30: #{attention_gate_pallas.5} parent=5 // pred_check_branch
        %187 = sbr.rel (%p184) target = $region32
      $region31: #{attention_gate_pallas.5} parent=5 // pred_region
        %s188 = ssub.s32 %s10, 1
        // Predicated region
        $region33: #{attention_gate_pallas.5} parent=31 // pred_check
          %p189 = pneg %p99
        $region34: #{attention_gate_pallas.5} parent=31 // pred_check_branch
          %191 = sbr.rel (%p189) target = $region36
        $region35: #{attention_gate_pallas.5} parent=31 // pred_region
          %192 = dma.done [#allocation3], 16
        $region36: #{attention_gate_pallas.5} parent=31 // pred_fallthru
          _
        %193 = sfence
        %s194 = smul.u32 2, %s20
        %p195 = scmp.lt.s32.totalorder %s19, 1
        %s196 = scalar_select %p195, %s19, 1
        %p197 = scmp.lt.s32.totalorder %s194, 1
        %s198 = scalar_select %p197, %s194, 1
        %s199 = smul.addr %s196, 2
        %s200 = sadd.s32 %s198, %s199
        %s201 = smul.addr %s200, 4
        %s202 = scalar_lea.vmem %s0, %s201
        %p203 = pneg %p50
        %p204 = pneg %p47
        %s205 = smul.u32 2, %s20
        %p206 = scmp.lt.s32.totalorder %s19, 1
        %s207 = scalar_select %p206, %s19, 1
        %p208 = scmp.lt.s32.totalorder %s205, 1
        %s209 = scalar_select %p208, %s205, 1
        %s210 = smul.addr %s207, 2
        %s211 = sadd.s32 %s209, %s210
        %s212 = scalar_lea.vmem %s1, %s211
        %p213 = pneg %p78
        %p214 = pneg %p75
        %p215 = pneg %p99
        %p216 = pneg %p96
        %p217 = pneg %p127
        %p218 = pneg %p124
        %s219 = smul.u32 2, %s20
        %p220 = scmp.lt.s32.totalorder %s19, 1
        %s221 = scalar_select %p220, %s19, 1
        %p222 = scmp.lt.s32.totalorder %s219, 1
        %s223 = scalar_select %p222, %s219, 1
        %s224 = smul.addr %s221, 2
        %s225 = sadd.s32 %s223, %s224
        %s226 = smul.addr %s225, 4
        %s227 = scalar_lea.vmem %s3, %s226
        %s228 = smul.u32 2, %s20
        %p229 = scmp.lt.s32.totalorder %s19, 1
        %s230 = scalar_select %p229, %s19, 1
        %p231 = scmp.lt.s32.totalorder %s228, 1
        %s232 = scalar_select %p231, %s228, 1
        %s233 = smul.addr %s230, 2
        %s234 = sadd.s32 %s232, %s233
        %s235 = smul.addr %s234, 4
        %s236 = scalar_lea.vmem %s0, %s235
        %s237 = smul.u32 2, %s20
        %s238 = smul.u32 2, %s20
        %p239 = scmp.lt.s32.totalorder %s19, 1
        %s240 = scalar_select %p239, %s19, 1
        %p241 = scmp.lt.s32.totalorder %s238, 1
        %s242 = scalar_select %p241, %s238, 1
        %s243 = smul.addr %s240, 2
        %s244 = sadd.s32 %s242, %s243
        %s245 = scalar_lea.vmem %s1, %s244
        %s246 = smul.u32 2, %s20
        %s247 = smul.u32 2, %s20
        %p248 = scmp.lt.s32.totalorder %s19, 1
        %s249 = scalar_select %p248, %s19, 1
        %p250 = scmp.lt.s32.totalorder %s247, 1
        %s251 = scalar_select %p250, %s247, 1
        %s252 = smul.addr %s249, 2
        %s253 = sadd.s32 %s251, %s252
        %s254 = smul.addr %s253, 4
        %s255 = scalar_lea.vmem %s3, %s254
        %s256 = smul.u32 2, %s20
        %v257 = vld [vmem:[%s245] sm:$0x3]
        %s258 = sld [smem:[#allocation2]]
        %v259 = vstv %s258
        %v260 = vmul.f32 %v257, %v259
        %s261 = sld [smem:[#allocation2 + $0x1]]
        %v262 = vstv %s261
        %v263 = vadd.f32 %v260, %v262
        %v264 = vxor.u32 %v263, 2147483648
        %v265 = vmul.f32 %v264, 1.442695
        %v266 = vpow.pop %v265
        %v267 = vadd.f32 %v266, 1.0
        %v268 = vrcp.pop %v267
        %v269 = vmul.f32 1.0, %v268
        %v270 = vld [vmem:[%s236] sm:$0xff]
        %v272 = vlaneseq
        %v273 = vshrl.u32 %v272, 7
        %v274 = vsub.s32 0, %v273
        %v275 = vrot.slane %v269, %v274
        %v276 = vlaneseq
        %v277 = vshrl.u32 %v276, 7
        %v278 = vsub.s32 1, %v277
        %v279 = vrot.slane %v269, %v278
        %v280 = vcombine.low %v275, %v279
        %v282 = vmul.f32 %v270, %v280
        %283 = vst [vmem:[%s255] sm:$0xff] %v282
        %s284 = smul.u32 2, %s20
        %p285 = scmp.lt.s32.totalorder %s19, 1
        %s286 = scalar_select %p285, %s19, 1
        %p287 = scmp.lt.s32.totalorder %s284, 1
        %s288 = scalar_select %p287, %s284, 1
        %s289 = smul.addr %s286, 2
        %s290 = sadd.s32 %s288, %s289
        %s291 = smul.addr %s290, 4
        %s292 = scalar_lea.vmem %s3, %s291
        // Predicated region
        $region37: #{attention_gate_pallas.5} parent=31 // pred_check
          %p293 = pneg %p124
        $region38: #{attention_gate_pallas.5} parent=31 // pred_check_branch
          %295 = sbr.rel (%p293) target = $region40
        $region39: #{attention_gate_pallas.5} parent=31 // pred_region
          %s296 = smul.u32 2, %s20
        $region40: #{attention_gate_pallas.5} parent=31 // pred_fallthru
          _
      $region32: #{attention_gate_pallas.5} parent=5 // pred_fallthru
        _
      %p297 = scmp.le.s32.totalorder 2, %s10
      // Predicated region
      $region41: #{attention_gate_pallas.5} parent=5 // pred_check
        %p298 = pneg %p297
      $region42: #{attention_gate_pallas.5} parent=5 // pred_check_branch
        %300 = sbr.rel (%p298) target = $region44
      $region43: #{attention_gate_pallas.5} parent=5 // pred_region
        %s301 = ssub.s32 %s10, 2
        // Predicated region
        $region45: #{attention_gate_pallas.5} parent=43 // pred_check
          %p302 = pneg %p130
        $region46: #{attention_gate_pallas.5} parent=43 // pred_check_branch
          %304 = sbr.rel (%p302) target = $region48
        $region47: #{attention_gate_pallas.5} parent=43 // pred_region
          %s305 = smul.u32 2, %s22
          %p306 = scmp.lt.s32.totalorder %s21, 1
          %s307 = scalar_select %p306, %s21, 1
          %p308 = scmp.lt.s32.totalorder %s305, 1
          %s309 = scalar_select %p308, %s305, 1
          %s310 = smul.addr %s307, 2
          %s311 = sadd.s32 %s309, %s310
          %s312 = smul.addr %s311, 4
          %s313 = scalar_lea.vmem %s3, %s312
        $region48: #{attention_gate_pallas.5} parent=43 // pred_fallthru
          _
      $region44: #{attention_gate_pallas.5} parent=5 // pred_fallthru
        _
    $region6: #{attention_gate_pallas.5} parent=1 // loop_footer
      %s14 = sadd.s32 1, %s10
    $region7: #{attention_gate_pallas.5} parent=1 // loop_footer_branch
      %9 = sbr.rel target = $region3
    $region8: #{attention_gate_pallas.5} parent=1 // loop_exit
      _
    %314 = vsyncpa [#allocation3], 1
    %s315 = scalar_lea.sflag [#allocation3], 1
    %316 = vsyncpa %s315, 1

</llo_original>
